<compile_context>
chip_gen: v7x
topology: tpu7x:2x2x1
jax: 0.10.0
libtpu: 0.0.40
codegen_flags: <defaults>
</compile_context>

<pallas_src>
import jax
import jax.numpy as jnp
from jax import lax
from jax.experimental import pallas as pl
from jax.experimental.pallas import tpu as pltpu

NUM_CLASSES = 13
LANE = 128


def _make_kernel(T, Bp, H):
    """Build the fused kernel for a (Bp sentences, T tokens) batch."""
    H2 = 2 * H          # concatenated [fwd | bwd] state width
    G = 4 * H2          # gate lanes: [i_f i_b | f_f f_b | g_f g_b | o_f o_b]
    TB = T * Bp

    def kernel(ids_ref,      # (T*Bp, 1) int32, row r = t*Bp + b        (VMEM)
               embed_ref,    # (Vpad, E)  bf16 embedding table          (VMEM)
               win_ref,      # (E, G)     bf16 merged fwd+bwd input proj
               b_ref,        # (1, G)     f32 combined biases (g lanes pre-scaled)
               whh_ref,      # (2H, G)    bf16 block-diag recurrent weights
               wout_ref,     # (2H, 128)  bf16 output linear (lane padded)
               bout_ref,     # (1, 128)   f32
               out_ref,      # (Bp, 128)  f32
               xg_scr):      # (T*Bp, G)  f32 VMEM scratch
        V = embed_ref.shape[0]

        # ---- embedding gather as a one-hot MXU matmul (no dynamic slices) ----
        ids = ids_ref[...]                                              # (TB, 1)
        onehot = (ids == lax.broadcasted_iota(jnp.int32, (TB, V), 1)
                  ).astype(jnp.bfloat16)                                # (TB, V)
        x = jnp.dot(onehot, embed_ref[...],
                    preferred_element_type=jnp.float32).astype(jnp.bfloat16)

        # ---- single dense input projection (hoisted off the serial chain) ----
        xg_scr[...] = (jnp.dot(x, win_ref[...],
                               preferred_element_type=jnp.float32)
                       + b_ref[...])                                    # (TB, G)

        lane = lax.broadcasted_iota(jnp.int32, (1, G), 1)
        fwd_mask = (lane % H2) < H                  # fwd half of each gate block
        g_lane = (lane >= 2 * H2) & (lane < 3 * H2)  # g-gate lanes
        mulv = jnp.where(g_lane, 2.0, 1.0).astype(jnp.float32)
        addv = jnp.where(g_lane, -1.0, 0.0).astype(jnp.float32)

        whh = whh_ref[...]                                              # bf16
        h = jnp.zeros((Bp, H2), jnp.float32)        # [h_fwd | h_bwd]
        c = jnp.zeros((Bp, H2), jnp.float32)

        # T is small & static: full unroll gives the scheduler visibility across
        # steps (the per-step xg selects are independent of the recurrence).
        for t in range(T):
            zf = xg_scr[pl.ds(t * Bp, Bp), :]              # fwd lanes: token t
            zb = xg_scr[pl.ds((T - 1 - t) * Bp, Bp), :]    # bwd lanes: token T-1-t
            z = jnp.where(fwd_mask, zf, zb) + jnp.dot(
                h.astype(jnp.bfloat16), whh, preferred_element_type=jnp.float32)
            s = jax.nn.sigmoid(z)                 # one EUP pass over all gates
            a = s * mulv + addv                   # g lanes: 2*sigmoid(2x)-1 = tanh(x)
            i_g = a[:, 0 * H2:1 * H2]
            f_g = a[:, 1 * H2:2 * H2]
            g_g = a[:, 2 * H2:3 * H2]
            o_g = a[:, 3 * H2:4 * H2]
            c = f_g * c + i_g * g_g
            h = o_g * jnp.tanh(c)

        # h == cat(h_n[fwd], h_n[bwd]); final 13-class projection (lane-padded).
        out_ref[...] = (jnp.dot(h.astype(jnp.bfloat16), wout_ref[...],
                                preferred_element_type=jnp.float32)
                        + bout_ref[...])

    return kernel


# ----------------------------------------------------------------------------
# Parameters (PyTorch layout) and one-time re-layout into kernel operands.
# ----------------------------------------------------------------------------

def init_params(key, vocab_size, embed_size, hidden_size, num_classes=NUM_CLASSES):
    """PyTorch-layout parameters (gate order i, f, g, o; separate b_ih / b_hh)."""
    H, E = hidden_size, embed_size
    ks = jax.random.split(key, 11)
    k = 1.0 / (H ** 0.5)
    ko = 1.0 / ((2 * H) ** 0.5)

    def u(kk, shape, s):
        return jax.random.uniform(kk, shape, jnp.float32, -s, s)

    return {
        "embed":  jax.random.normal(ks[0], (vocab_size, E), jnp.float32),
        "w_ih_f": u(ks[1], (4 * H, E), k), "w_hh_f": u(ks[2], (4 * H, H), k),
        "b_ih_f": u(ks[3], (4 * H,), k),   "b_hh_f": u(ks[4], (4 * H,), k),
        "w_ih_b": u(ks[5], (4 * H, E), k), "w_hh_b": u(ks[6], (4 * H, H), k),
        "b_ih_b": u(ks[7], (4 * H,), k),   "b_hh_b": u(ks[8], (4 * H,), k),
        "w_out":  u(ks[9], (num_classes, 2 * H), ko),
        "b_out":  u(ks[10], (num_classes,), ko),
    }


def prepare_kernel_params(p, hidden_size, num_classes=NUM_CLASSES):
    """Re-layout PyTorch-style weights into fused kernel operands."""
    H = hidden_size
    H2 = 2 * H

    def gate_blocks(w_t):                 # (in, 4H) -> 4 blocks (in, H): i, f, g, o
        return [w_t[:, k * H:(k + 1) * H] for k in range(4)]

    def interleave(fwd, bwd):             # -> [i_f i_b | f_f f_b | g_f g_b | o_f o_b]
        cols = []
        for fb, bb in zip(fwd, bwd):
            cols += [fb, bb]
        return jnp.concatenate(cols, axis=-1)

    # Merged dense input projection (both directions in one matrix).
    win = interleave(gate_blocks(p["w_ih_f"].T), gate_blocks(p["w_ih_b"].T))   # (E, 8H)

    zH = jnp.zeros((H, H), jnp.float32)
    whh = jnp.concatenate(
        [interleave(gate_blocks(p["w_hh_f"].T), [zH] * 4),    # rows 0:H   <- h_fwd
         interleave([zH] * 4, gate_blocks(p["w_hh_b"].T))],   # rows H:2H  <- h_bwd
        axis=0)                                               # (2H, 8H)

    bf = (p["b_ih_f"] + p["b_hh_f"])[None, :]
    bb = (p["b_ih_b"] + p["b_hh_b"])[None, :]
    b = interleave(gate_blocks(bf), gate_blocks(bb))          # (1, 8H)

    # Fold tanh(x) = 2*sigmoid(2x) - 1 into the g-gate columns (exact in bf16).
    gscale = jnp.ones((8 * H,), jnp.float32).at[4 * H:6 * H].set(2.0)
    win = win * gscale
    whh = whh * gscale
    b = b * gscale

    wout = jnp.zeros((H2, LANE), jnp.float32).at[:, :num_classes].set(p["w_out"].T)
    bout = jnp.zeros((1, LANE), jnp.float32).at[:, :num_classes].set(p["b_out"][None, :])

    V = p["embed"].shape[0]
    Vpad = ((V + LANE - 1) // LANE) * LANE                    # lane-dense one-hot
    embed = jnp.pad(p["embed"], ((0, Vpad - V), (0, 0)))

    return {
        "embed": embed.astype(jnp.bfloat16),
        "win":   win.astype(jnp.bfloat16),
        "b":     b.astype(jnp.float32),
        "whh":   whh.astype(jnp.bfloat16),
        "wout":  wout.astype(jnp.bfloat16),
        "bout":  bout.astype(jnp.float32),
    }


# ----------------------------------------------------------------------------
# Wrappers
# ----------------------------------------------------------------------------

def _forward_batch(ids_bt, kp):
    """ids_bt: (B, T) int token ids -> (B, NUM_CLASSES) f32 scores."""
    B, T = ids_bt.shape
    Bp = ((B + 7) // 8) * 8                       # sublane-aligned batch
    H2, G = kp["whh"].shape
    H = H2 // 2
    E = kp["win"].shape[0]
    V = kp["embed"].shape[0]

    ids = jnp.zeros((Bp, T), jnp.int32).at[:B, :].set(ids_bt.astype(jnp.int32))
    ids_tm = ids.T.reshape(T * Bp, 1)             # row r = t*Bp + b (time-major)

    operands = (ids_tm, kp["embed"], kp["win"], kp["b"],
                kp["whh"], kp["wout"], kp["bout"])

    def full_spec(shape):
        return pl.BlockSpec(shape, lambda i: (0, 0))

    flops = (2 * T * Bp * (V * E + E * G)          # gather + input projection
             + 2 * T * Bp * H2 * G                 # recurrent matmuls
             + 2 * Bp * H2 * LANE)                 # output projection
    transcendentals = T * Bp * (G + H2)
    bytes_accessed = (sum(int(x.size) * x.dtype.itemsize for x in operands)
                      + Bp * LANE * 4)

    out = pl.pallas_call(
        _make_kernel(T, Bp, H),
        out_shape=jax.ShapeDtypeStruct((Bp, LANE), jnp.float32),
        grid_spec=pltpu.PrefetchScalarGridSpec(
            num_scalar_prefetch=0,
            grid=(1,),
            in_specs=[full_spec(x.shape) for x in operands],
            out_specs=full_spec((Bp, LANE)),
            scratch_shapes=[pltpu.VMEM((T * Bp, G), jnp.float32)],
        ),
        compiler_params=pltpu.CompilerParams(
            dimension_semantics=("arbitrary",)),
        cost_estimate=pl.CostEstimate(flops=flops,
                                      transcendentals=transcendentals,
                                      bytes_accessed=bytes_accessed),
    )(*operands)
    return out[:B, :NUM_CLASSES]


@jax.jit
def intent_model_forward(sentence, kp):
    """sentence: (T,) int token ids -> (1, 13) f32 scores (matches PyTorch forward)."""
    return _forward_batch(sentence[None, :], kp)


@jax.jit
def intent_model_forward_batched(sentences, kp):
    """sentences: (B, T) int token ids -> (B, 13) f32 scores."""
    return _forward_batch(sentences, kp)


# ----------------------------------------------------------------------------
# Pure-JAX f32 reference (PyTorch semantics, eval-mode dropout = identity).
# ----------------------------------------------------------------------------

def reference_forward(sentence, p):
    H = p["w_hh_f"].shape[1]
    x = p["embed"][sentence]                      # (T, E)

    def run(xs, w_ih, w_hh, b_ih, b_hh):
        h = jnp.zeros((H,), jnp.float32)
        c = jnp.zeros((H,), jnp.float32)
        for t in range(xs.shape[0]):
            z = w_ih @ xs[t] + b_ih + w_hh @ h + b_hh
            i = jax.nn.sigmoid(z[0 * H:1 * H])
            f = jax.nn.sigmoid(z[1 * H:2 * H])
            g = jnp.tanh(z[2 * H:3 * H])
            o = jax.nn.sigmoid(z[3 * H:4 * H])
            c = f * c + i * g
            h = o * jnp.tanh(c)
        return h

    h_f = run(x, p["w_ih_f"], p["w_hh_f"], p["b_ih_f"], p["b_hh_f"])
    h_b = run(x[::-1], p["w_ih_b"], p["w_hh_b"], p["b_ih_b"], p["b_hh_b"])
    feats = jnp.concatenate([h_f, h_b])
    return (p["w_out"] @ feats + p["b_out"])[None, :]


if __name__ == "__main__":
    VOCAB, EMBED, HIDDEN, SEQ = 50, 32, 32, 8

    key = jax.random.PRNGKey(0)
    k_par, k_sent, k_batch = jax.random.split(key, 3)
    params = init_params(k_par, VOCAB, EMBED, HIDDEN)
    kernel_params = prepare_kernel_params(params, HIDDEN)

    # Single sentence (matches the PyTorch module's forward).
    sentence = jax.random.randint(k_sent, (SEQ,), 0, VOCAB, dtype=jnp.int32)
    score = intent_model_forward(sentence, kernel_params)
    score = jax.block_until_ready(score)
    assert score.shape == (1, NUM_CLASSES) and score.dtype == jnp.float32

    ref = reference_forward(sentence, params)
    err = float(jnp.max(jnp.abs(score - ref)))
    assert err < 8e-2, f"single-sentence mismatch vs reference: max abs err {err}"

    # Small batch through the same kernel (amortizes per-call / MXU-row cost).
    batch = jax.random.randint(k_batch, (4, SEQ), 0, VOCAB, dtype=jnp.int32)
    scores_b = jax.block_until_ready(intent_model_forward_batched(batch, kernel_params))
    assert scores_b.shape == (4, NUM_CLASSES)
    ref_b = jnp.concatenate([reference_forward(batch[i], params) for i in range(4)], axis=0)
    err_b = float(jnp.max(jnp.abs(scores_b - ref_b)))
    assert err_b < 8e-2, f"batched mismatch vs reference: max abs err {err_b}"

    print("KERNEL_OK")
</pallas_src>

<mosaic_0001>
module attributes {stable_mosaic.version = 11 : i64} {
  func.func @kernel(%arg0: i32, %arg1: memref<64x1xi32, #tpu.memory_space<vmem>>, %arg2: memref<128x32xbf16, #tpu.memory_space<vmem>>, %arg3: memref<32x256xbf16, #tpu.memory_space<vmem>>, %arg4: memref<1x256xf32, #tpu.memory_space<vmem>>, %arg5: memref<64x256xbf16, #tpu.memory_space<vmem>>, %arg6: memref<64x128xbf16, #tpu.memory_space<vmem>>, %arg7: memref<1x128xf32, #tpu.memory_space<vmem>>, %arg8: memref<8x128xf32, #tpu.memory_space<vmem>>, %arg9: memref<64x256xf32, #tpu.memory_space<vmem>>) attributes {dimension_semantics = [#tpu.dimension_semantics<arbitrary>], iteration_bounds = array<i64: 1>, scalar_prefetch = 0 : i64, scratch_operands = 1 : i64, tpu.core_type = #tpu.core_type<tc>, window_params = [{pipeline_mode = #tpu.pipeline_mode<synchronous>, transform_indices = @transform_0, window_bounds = array<i64: 64, 1>}, {pipeline_mode = #tpu.pipeline_mode<synchronous>, transform_indices = @transform_1, window_bounds = array<i64: 128, 32>}, {pipeline_mode = #tpu.pipeline_mode<synchronous>, transform_indices = @transform_2, window_bounds = array<i64: 32, 256>}, {pipeline_mode = #tpu.pipeline_mode<synchronous>, transform_indices = @transform_3, window_bounds = array<i64: 1, 256>}, {pipeline_mode = #tpu.pipeline_mode<synchronous>, transform_indices = @transform_4, window_bounds = array<i64: 64, 256>}, {pipeline_mode = #tpu.pipeline_mode<synchronous>, transform_indices = @transform_5, window_bounds = array<i64: 64, 128>}, {pipeline_mode = #tpu.pipeline_mode<synchronous>, transform_indices = @transform_6, window_bounds = array<i64: 1, 128>}, {pipeline_mode = #tpu.pipeline_mode<synchronous>, transform_indices = @transform_7, window_bounds = array<i64: 8, 128>}]} {
    %c0 = arith.constant 0 : index
    %c0_0 = arith.constant 0 : index
    %0 = vector.load %arg1[%c0, %c0_0] : memref<64x1xi32, #tpu.memory_space<vmem>>, vector<64x1xi32>
    %1 = tpu.iota {dimensions = array<i32: 1>} : vector<64x128xi32>
    %2 = vector.broadcast %0 : vector<64x1xi32> to vector<64x128xi32>
    %3 = arith.cmpi eq, %2, %1 : vector<64x128xi32>
    %4 = arith.extui %3 : vector<64x128xi1> to vector<64x128xi32>
    %5 = arith.sitofp %4 : vector<64x128xi32> to vector<64x128xf32>
    %6 = arith.truncf %5 : vector<64x128xf32> to vector<64x128xbf16>
    %c0_1 = arith.constant 0 : index
    %c0_2 = arith.constant 0 : index
    %7 = vector.load %arg2[%c0_1, %c0_2] : memref<128x32xbf16, #tpu.memory_space<vmem>>, vector<128x32xbf16>
    %cst = arith.constant dense<0.000000e+00> : vector<64x32xf32>
    %8 = tpu.matmul %6, %7, %cst {dimension_numbers = #tpu.dot_dimension_numbers<[1], [0], [0], [1], [0, 0, 1, 1], [], []>} : vector<64x128xbf16>, vector<128x32xbf16>, vector<64x32xf32> -> vector<64x32xf32>
    %9 = arith.truncf %8 : vector<64x32xf32> to vector<64x32xbf16>
    %c0_3 = arith.constant 0 : index
    %c0_4 = arith.constant 0 : index
    %10 = vector.load %arg3[%c0_3, %c0_4] : memref<32x256xbf16, #tpu.memory_space<vmem>>, vector<32x256xbf16>
    %cst_5 = arith.constant dense<0.000000e+00> : vector<64x256xf32>
    %11 = tpu.matmul %9, %10, %cst_5 {dimension_numbers = #tpu.dot_dimension_numbers<[1], [0], [0], [1], [0, 0, 1, 1], [], []>} : vector<64x32xbf16>, vector<32x256xbf16>, vector<64x256xf32> -> vector<64x256xf32>
    %c0_6 = arith.constant 0 : index
    %c0_7 = arith.constant 0 : index
    %12 = vector.load %arg4[%c0_6, %c0_7] : memref<1x256xf32, #tpu.memory_space<vmem>>, vector<1x256xf32>
    %13 = vector.broadcast %12 : vector<1x256xf32> to vector<64x256xf32>
    %14 = arith.addf %11, %13 : vector<64x256xf32>
    %c0_8 = arith.constant 0 : index
    %c0_9 = arith.constant 0 : index
    %15 = vector.load %arg9[%c0_8, %c0_9] : memref<64x256xf32, #tpu.memory_space<vmem>>, vector<64x256xf32>
    tpu.vector_store %arg9[%c0_8, %c0_9], %14 {strides = array<i32>} : memref<64x256xf32, #tpu.memory_space<vmem>>, vector<64x256xf32>,
    %16 = tpu.iota {dimensions = array<i32: 1>} : vector<1x256xi32>
    %c64_i32 = arith.constant 64 : i32
    %c0_i32 = arith.constant 0 : i32
    %17 = arith.cmpi eq, %c64_i32, %c0_i32 : i32
    %c1_i32 = arith.constant 1 : i32
    %18 = arith.select %17, %c1_i32, %c64_i32 : i32
    %19 = vector.broadcast %18 : i32 to vector<1x256xi32>
    %20 = arith.remsi %16, %19 : vector<1x256xi32>
    %c0_i32_10 = arith.constant 0 : i32
    %21 = vector.broadcast %c0_i32_10 : i32 to vector<1x256xi32>
    %22 = arith.cmpi ne, %20, %21 : vector<1x256xi32>
    %c0_i32_11 = arith.constant 0 : i32
    %23 = vector.broadcast %c0_i32_11 : i32 to vector<1x256xi32>
    %24 = arith.cmpi slt, %20, %23 : vector<1x256xi32>
    %c0_i32_12 = arith.constant 0 : i32
    %25 = arith.cmpi slt, %18, %c0_i32_12 : i32
    %26 = vector.broadcast %25 : i1 to vector<1x256xi1>
    %27 = vector.broadcast %26 : vector<1x256xi1> to vector<1x256xi1>
    %28 = arith.xori %24, %27 : vector<1x256xi1>
    %29 = arith.andi %28, %22 : vector<1x256xi1>
    %30 = vector.broadcast %18 : i32 to vector<1x256xi32>
    %31 = arith.addi %20, %30 : vector<1x256xi32>
    %32 = arith.select %29, %31, %20 : vector<1x256xi1>, vector<1x256xi32>
    %c32_i32 = arith.constant 32 : i32
    %33 = vector.broadcast %c32_i32 : i32 to vector<1x256xi32>
    %34 = arith.cmpi slt, %32, %33 : vector<1x256xi32>
    %c128_i32 = arith.constant 128 : i32
    %35 = vector.broadcast %c128_i32 : i32 to vector<1x256xi32>
    %36 = arith.cmpi sge, %16, %35 : vector<1x256xi32>
    %c192_i32 = arith.constant 192 : i32
    %37 = vector.broadcast %c192_i32 : i32 to vector<1x256xi32>
    %38 = arith.cmpi slt, %16, %37 : vector<1x256xi32>
    %39 = arith.andi %36, %38 : vector<1x256xi1>
    %cst_13 = arith.constant 2.000000e+00 : f32
    %cst_14 = arith.constant 1.000000e+00 : f32
    %40 = vector.broadcast %cst_13 : f32 to vector<1x256xf32>
    %41 = vector.broadcast %cst_14 : f32 to vector<1x256xf32>
    %42 = arith.select %39, %40, %41 : vector<1x256xi1>, vector<1x256xf32>
    %cst_15 = arith.constant -1.000000e+00 : f32
    %cst_16 = arith.constant 0.000000e+00 : f32
    %43 = vector.broadcast %cst_15 : f32 to vector<1x256xf32>
    %44 = vector.broadcast %cst_16 : f32 to vector<1x256xf32>
    %45 = arith.select %39, %43, %44 : vector<1x256xi1>, vector<1x256xf32>
    %c0_17 = arith.constant 0 : index
    %c0_18 = arith.constant 0 : index
    %46 = vector.load %arg5[%c0_17, %c0_18] : memref<64x256xbf16, #tpu.memory_space<vmem>>, vector<64x256xbf16>
    %cst_19 = arith.constant 0.000000e+00 : f32
    %47 = vector.broadcast %cst_19 : f32 to vector<8x64xf32>
    %cst_20 = arith.constant 0.000000e+00 : f32
    %48 = vector.broadcast %cst_20 : f32 to vector<8x64xf32>
    %c0_21 = arith.constant 0 : index
    %c0_22 = arith.constant 0 : index
    %49 = vector.load %arg9[%c0_21, %c0_22] : memref<64x256xf32, #tpu.memory_space<vmem>>, vector<8x256xf32>
    %c56 = arith.constant 56 : index
    %c0_23 = arith.constant 0 : index
    %50 = vector.load %arg9[%c56, %c0_23] : memref<64x256xf32, #tpu.memory_space<vmem>>, vector<8x256xf32>
    %51 = vector.shape_cast %34 : vector<1x256xi1> to vector<1x256xi1>
    %52 = vector.broadcast %51 : vector<1x256xi1> to vector<8x256xi1>
    %53 = arith.select %52, %49, %50 : vector<8x256xi1>, vector<8x256xf32>
    %54 = arith.truncf %47 : vector<8x64xf32> to vector<8x64xbf16>
    %cst_24 = arith.constant dense<0.000000e+00> : vector<8x256xf32>
    %55 = tpu.matmul %54, %46, %cst_24 {dimension_numbers = #tpu.dot_dimension_numbers<[1], [0], [0], [1], [0, 0, 1, 1], [], []>} : vector<8x64xbf16>, vector<64x256xbf16>, vector<8x256xf32> -> vector<8x256xf32>
    %56 = arith.addf %53, %55 : vector<8x256xf32>
    %57 = arith.negf %56 : vector<8x256xf32>
    %58 = math.exp %57 : vector<8x256xf32>
    %cst_25 = arith.constant 1.000000e+00 : f32
    %59 = vector.broadcast %cst_25 : f32 to vector<8x256xf32>
    %60 = arith.addf %59, %58 : vector<8x256xf32>
    %61 = arith.divf %59, %60 : vector<8x256xf32>
    %62 = vector.broadcast %42 : vector<1x256xf32> to vector<8x256xf32>
    %63 = arith.mulf %61, %62 : vector<8x256xf32>
    %64 = vector.broadcast %45 : vector<1x256xf32> to vector<8x256xf32>
    %65 = arith.addf %63, %64 : vector<8x256xf32>
    %66 = vector.extract_strided_slice %65 {offsets = [0, 0], sizes = [8, 64], strides = [1, 1]} : vector<8x256xf32> to vector<8x64xf32>
    %67 = vector.extract_strided_slice %65 {offsets = [0, 64], sizes = [8, 64], strides = [1, 1]} : vector<8x256xf32> to vector<8x64xf32>
    %68 = vector.extract_strided_slice %65 {offsets = [0, 128], sizes = [8, 64], strides = [1, 1]} : vector<8x256xf32> to vector<8x64xf32>
    %69 = vector.extract_strided_slice %65 {offsets = [0, 192], sizes = [8, 64], strides = [1, 1]} : vector<8x256xf32> to vector<8x64xf32>
    %70 = arith.mulf %67, %48 : vector<8x64xf32>
    %71 = arith.mulf %66, %68 : vector<8x64xf32>
    %72 = arith.addf %70, %71 : vector<8x64xf32>
    %73 = math.tanh %72 : vector<8x64xf32>
    %74 = arith.mulf %69, %73 : vector<8x64xf32>
    %c8 = arith.constant 8 : index
    %c0_26 = arith.constant 0 : index
    %75 = vector.load %arg9[%c8, %c0_26] : memref<64x256xf32, #tpu.memory_space<vmem>>, vector<8x256xf32>
    %c48 = arith.constant 48 : index
    %c0_27 = arith.constant 0 : index
    %76 = vector.load %arg9[%c48, %c0_27] : memref<64x256xf32, #tpu.memory_space<vmem>>, vector<8x256xf32>
    %77 = vector.shape_cast %34 : vector<1x256xi1> to vector<1x256xi1>
    %78 = vector.broadcast %77 : vector<1x256xi1> to vector<8x256xi1>
    %79 = arith.select %78, %75, %76 : vector<8x256xi1>, vector<8x256xf32>
    %80 = arith.truncf %74 : vector<8x64xf32> to vector<8x64xbf16>
    %cst_28 = arith.constant dense<0.000000e+00> : vector<8x256xf32>
    %81 = tpu.matmul %80, %46, %cst_28 {dimension_numbers = #tpu.dot_dimension_numbers<[1], [0], [0], [1], [0, 0, 1, 1], [], []>} : vector<8x64xbf16>, vector<64x256xbf16>, vector<8x256xf32> -> vector<8x256xf32>
    %82 = arith.addf %79, %81 : vector<8x256xf32>
    %83 = arith.negf %82 : vector<8x256xf32>
    %84 = math.exp %83 : vector<8x256xf32>
    %cst_29 = arith.constant 1.000000e+00 : f32
    %85 = vector.broadcast %cst_29 : f32 to vector<8x256xf32>
    %86 = arith.addf %85, %84 : vector<8x256xf32>
    %87 = arith.divf %85, %86 : vector<8x256xf32>
    %88 = vector.broadcast %42 : vector<1x256xf32> to vector<8x256xf32>
    %89 = arith.mulf %87, %88 : vector<8x256xf32>
    %90 = vector.broadcast %45 : vector<1x256xf32> to vector<8x256xf32>
    %91 = arith.addf %89, %90 : vector<8x256xf32>
    %92 = vector.extract_strided_slice %91 {offsets = [0, 0], sizes = [8, 64], strides = [1, 1]} : vector<8x256xf32> to vector<8x64xf32>
    %93 = vector.extract_strided_slice %91 {offsets = [0, 64], sizes = [8, 64], strides = [1, 1]} : vector<8x256xf32> to vector<8x64xf32>
    %94 = vector.extract_strided_slice %91 {offsets = [0, 128], sizes = [8, 64], strides = [1, 1]} : vector<8x256xf32> to vector<8x64xf32>
    %95 = vector.extract_strided_slice %91 {offsets = [0, 192], sizes = [8, 64], strides = [1, 1]} : vector<8x256xf32> to vector<8x64xf32>
    %96 = arith.mulf %93, %72 : vector<8x64xf32>
    %97 = arith.mulf %92, %94 : vector<8x64xf32>
    %98 = arith.addf %96, %97 : vector<8x64xf32>
    %99 = math.tanh %98 : vector<8x64xf32>
    %100 = arith.mulf %95, %99 : vector<8x64xf32>
    %c16 = arith.constant 16 : index
    %c0_30 = arith.constant 0 : index
    %101 = vector.load %arg9[%c16, %c0_30] : memref<64x256xf32, #tpu.memory_space<vmem>>, vector<8x256xf32>
    %c40 = arith.constant 40 : index
    %c0_31 = arith.constant 0 : index
    %102 = vector.load %arg9[%c40, %c0_31] : memref<64x256xf32, #tpu.memory_space<vmem>>, vector<8x256xf32>
    %103 = vector.shape_cast %34 : vector<1x256xi1> to vector<1x256xi1>
    %104 = vector.broadcast %103 : vector<1x256xi1> to vector<8x256xi1>
    %105 = arith.select %104, %101, %102 : vector<8x256xi1>, vector<8x256xf32>
    %106 = arith.truncf %100 : vector<8x64xf32> to vector<8x64xbf16>
    %cst_32 = arith.constant dense<0.000000e+00> : vector<8x256xf32>
    %107 = tpu.matmul %106, %46, %cst_32 {dimension_numbers = #tpu.dot_dimension_numbers<[1], [0], [0], [1], [0, 0, 1, 1], [], []>} : vector<8x64xbf16>, vector<64x256xbf16>, vector<8x256xf32> -> vector<8x256xf32>
    %108 = arith.addf %105, %107 : vector<8x256xf32>
    %109 = arith.negf %108 : vector<8x256xf32>
    %110 = math.exp %109 : vector<8x256xf32>
    %cst_33 = arith.constant 1.000000e+00 : f32
    %111 = vector.broadcast %cst_33 : f32 to vector<8x256xf32>
    %112 = arith.addf %111, %110 : vector<8x256xf32>
    %113 = arith.divf %111, %112 : vector<8x256xf32>
    %114 = vector.broadcast %42 : vector<1x256xf32> to vector<8x256xf32>
    %115 = arith.mulf %113, %114 : vector<8x256xf32>
    %116 = vector.broadcast %45 : vector<1x256xf32> to vector<8x256xf32>
    %117 = arith.addf %115, %116 : vector<8x256xf32>
    %118 = vector.extract_strided_slice %117 {offsets = [0, 0], sizes = [8, 64], strides = [1, 1]} : vector<8x256xf32> to vector<8x64xf32>
    %119 = vector.extract_strided_slice %117 {offsets = [0, 64], sizes = [8, 64], strides = [1, 1]} : vector<8x256xf32> to vector<8x64xf32>
    %120 = vector.extract_strided_slice %117 {offsets = [0, 128], sizes = [8, 64], strides = [1, 1]} : vector<8x256xf32> to vector<8x64xf32>
    %121 = vector.extract_strided_slice %117 {offsets = [0, 192], sizes = [8, 64], strides = [1, 1]} : vector<8x256xf32> to vector<8x64xf32>
    %122 = arith.mulf %119, %98 : vector<8x64xf32>
    %123 = arith.mulf %118, %120 : vector<8x64xf32>
    %124 = arith.addf %122, %123 : vector<8x64xf32>
    %125 = math.tanh %124 : vector<8x64xf32>
    %126 = arith.mulf %121, %125 : vector<8x64xf32>
    %c24 = arith.constant 24 : index
    %c0_34 = arith.constant 0 : index
    %127 = vector.load %arg9[%c24, %c0_34] : memref<64x256xf32, #tpu.memory_space<vmem>>, vector<8x256xf32>
    %c32 = arith.constant 32 : index
    %c0_35 = arith.constant 0 : index
    %128 = vector.load %arg9[%c32, %c0_35] : memref<64x256xf32, #tpu.memory_space<vmem>>, vector<8x256xf32>
    %129 = vector.shape_cast %34 : vector<1x256xi1> to vector<1x256xi1>
    %130 = vector.broadcast %129 : vector<1x256xi1> to vector<8x256xi1>
    %131 = arith.select %130, %127, %128 : vector<8x256xi1>, vector<8x256xf32>
    %132 = arith.truncf %126 : vector<8x64xf32> to vector<8x64xbf16>
    %cst_36 = arith.constant dense<0.000000e+00> : vector<8x256xf32>
    %133 = tpu.matmul %132, %46, %cst_36 {dimension_numbers = #tpu.dot_dimension_numbers<[1], [0], [0], [1], [0, 0, 1, 1], [], []>} : vector<8x64xbf16>, vector<64x256xbf16>, vector<8x256xf32> -> vector<8x256xf32>
    %134 = arith.addf %131, %133 : vector<8x256xf32>
    %135 = arith.negf %134 : vector<8x256xf32>
    %136 = math.exp %135 : vector<8x256xf32>
    %cst_37 = arith.constant 1.000000e+00 : f32
    %137 = vector.broadcast %cst_37 : f32 to vector<8x256xf32>
    %138 = arith.addf %137, %136 : vector<8x256xf32>
    %139 = arith.divf %137, %138 : vector<8x256xf32>
    %140 = vector.broadcast %42 : vector<1x256xf32> to vector<8x256xf32>
    %141 = arith.mulf %139, %140 : vector<8x256xf32>
    %142 = vector.broadcast %45 : vector<1x256xf32> to vector<8x256xf32>
    %143 = arith.addf %141, %142 : vector<8x256xf32>
    %144 = vector.extract_strided_slice %143 {offsets = [0, 0], sizes = [8, 64], strides = [1, 1]} : vector<8x256xf32> to vector<8x64xf32>
    %145 = vector.extract_strided_slice %143 {offsets = [0, 64], sizes = [8, 64], strides = [1, 1]} : vector<8x256xf32> to vector<8x64xf32>
    %146 = vector.extract_strided_slice %143 {offsets = [0, 128], sizes = [8, 64], strides = [1, 1]} : vector<8x256xf32> to vector<8x64xf32>
    %147 = vector.extract_strided_slice %143 {offsets = [0, 192], sizes = [8, 64], strides = [1, 1]} : vector<8x256xf32> to vector<8x64xf32>
    %148 = arith.mulf %145, %124 : vector<8x64xf32>
    %149 = arith.mulf %144, %146 : vector<8x64xf32>
    %150 = arith.addf %148, %149 : vector<8x64xf32>
    %151 = math.tanh %150 : vector<8x64xf32>
    %152 = arith.mulf %147, %151 : vector<8x64xf32>
    %c32_38 = arith.constant 32 : index
    %c0_39 = arith.constant 0 : index
    %153 = vector.load %arg9[%c32_38, %c0_39] : memref<64x256xf32, #tpu.memory_space<vmem>>, vector<8x256xf32>
    %c24_40 = arith.constant 24 : index
    %c0_41 = arith.constant 0 : index
    %154 = vector.load %arg9[%c24_40, %c0_41] : memref<64x256xf32, #tpu.memory_space<vmem>>, vector<8x256xf32>
    %155 = vector.shape_cast %34 : vector<1x256xi1> to vector<1x256xi1>
    %156 = vector.broadcast %155 : vector<1x256xi1> to vector<8x256xi1>
    %157 = arith.select %156, %153, %154 : vector<8x256xi1>, vector<8x256xf32>
    %158 = arith.truncf %152 : vector<8x64xf32> to vector<8x64xbf16>
    %cst_42 = arith.constant dense<0.000000e+00> : vector<8x256xf32>
    %159 = tpu.matmul %158, %46, %cst_42 {dimension_numbers = #tpu.dot_dimension_numbers<[1], [0], [0], [1], [0, 0, 1, 1], [], []>} : vector<8x64xbf16>, vector<64x256xbf16>, vector<8x256xf32> -> vector<8x256xf32>
    %160 = arith.addf %157, %159 : vector<8x256xf32>
    %161 = arith.negf %160 : vector<8x256xf32>
    %162 = math.exp %161 : vector<8x256xf32>
    %cst_43 = arith.constant 1.000000e+00 : f32
    %163 = vector.broadcast %cst_43 : f32 to vector<8x256xf32>
    %164 = arith.addf %163, %162 : vector<8x256xf32>
    %165 = arith.divf %163, %164 : vector<8x256xf32>
    %166 = vector.broadcast %42 : vector<1x256xf32> to vector<8x256xf32>
    %167 = arith.mulf %165, %166 : vector<8x256xf32>
    %168 = vector.broadcast %45 : vector<1x256xf32> to vector<8x256xf32>
    %169 = arith.addf %167, %168 : vector<8x256xf32>
    %170 = vector.extract_strided_slice %169 {offsets = [0, 0], sizes = [8, 64], strides = [1, 1]} : vector<8x256xf32> to vector<8x64xf32>
    %171 = vector.extract_strided_slice %169 {offsets = [0, 64], sizes = [8, 64], strides = [1, 1]} : vector<8x256xf32> to vector<8x64xf32>
    %172 = vector.extract_strided_slice %169 {offsets = [0, 128], sizes = [8, 64], strides = [1, 1]} : vector<8x256xf32> to vector<8x64xf32>
    %173 = vector.extract_strided_slice %169 {offsets = [0, 192], sizes = [8, 64], strides = [1, 1]} : vector<8x256xf32> to vector<8x64xf32>
    %174 = arith.mulf %171, %150 : vector<8x64xf32>
    %175 = arith.mulf %170, %172 : vector<8x64xf32>
    %176 = arith.addf %174, %175 : vector<8x64xf32>
    %177 = math.tanh %176 : vector<8x64xf32>
    %178 = arith.mulf %173, %177 : vector<8x64xf32>
    %c40_44 = arith.constant 40 : index
    %c0_45 = arith.constant 0 : index
    %179 = vector.load %arg9[%c40_44, %c0_45] : memref<64x256xf32, #tpu.memory_space<vmem>>, vector<8x256xf32>
    %c16_46 = arith.constant 16 : index
    %c0_47 = arith.constant 0 : index
    %180 = vector.load %arg9[%c16_46, %c0_47] : memref<64x256xf32, #tpu.memory_space<vmem>>, vector<8x256xf32>
    %181 = vector.shape_cast %34 : vector<1x256xi1> to vector<1x256xi1>
    %182 = vector.broadcast %181 : vector<1x256xi1> to vector<8x256xi1>
    %183 = arith.select %182, %179, %180 : vector<8x256xi1>, vector<8x256xf32>
    %184 = arith.truncf %178 : vector<8x64xf32> to vector<8x64xbf16>
    %cst_48 = arith.constant dense<0.000000e+00> : vector<8x256xf32>
    %185 = tpu.matmul %184, %46, %cst_48 {dimension_numbers = #tpu.dot_dimension_numbers<[1], [0], [0], [1], [0, 0, 1, 1], [], []>} : vector<8x64xbf16>, vector<64x256xbf16>, vector<8x256xf32> -> vector<8x256xf32>
    %186 = arith.addf %183, %185 : vector<8x256xf32>
    %187 = arith.negf %186 : vector<8x256xf32>
    %188 = math.exp %187 : vector<8x256xf32>
    %cst_49 = arith.constant 1.000000e+00 : f32
    %189 = vector.broadcast %cst_49 : f32 to vector<8x256xf32>
    %190 = arith.addf %189, %188 : vector<8x256xf32>
    %191 = arith.divf %189, %190 : vector<8x256xf32>
    %192 = vector.broadcast %42 : vector<1x256xf32> to vector<8x256xf32>
    %193 = arith.mulf %191, %192 : vector<8x256xf32>
    %194 = vector.broadcast %45 : vector<1x256xf32> to vector<8x256xf32>
    %195 = arith.addf %193, %194 : vector<8x256xf32>
    %196 = vector.extract_strided_slice %195 {offsets = [0, 0], sizes = [8, 64], strides = [1, 1]} : vector<8x256xf32> to vector<8x64xf32>
    %197 = vector.extract_strided_slice %195 {offsets = [0, 64], sizes = [8, 64], strides = [1, 1]} : vector<8x256xf32> to vector<8x64xf32>
    %198 = vector.extract_strided_slice %195 {offsets = [0, 128], sizes = [8, 64], strides = [1, 1]} : vector<8x256xf32> to vector<8x64xf32>
    %199 = vector.extract_strided_slice %195 {offsets = [0, 192], sizes = [8, 64], strides = [1, 1]} : vector<8x256xf32> to vector<8x64xf32>
    %200 = arith.mulf %197, %176 : vector<8x64xf32>
    %201 = arith.mulf %196, %198 : vector<8x64xf32>
    %202 = arith.addf %200, %201 : vector<8x64xf32>
    %203 = math.tanh %202 : vector<8x64xf32>
    %204 = arith.mulf %199, %203 : vector<8x64xf32>
    %c48_50 = arith.constant 48 : index
    %c0_51 = arith.constant 0 : index
    %205 = vector.load %arg9[%c48_50, %c0_51] : memref<64x256xf32, #tpu.memory_space<vmem>>, vector<8x256xf32>
    %c8_52 = arith.constant 8 : index
    %c0_53 = arith.constant 0 : index
    %206 = vector.load %arg9[%c8_52, %c0_53] : memref<64x256xf32, #tpu.memory_space<vmem>>, vector<8x256xf32>
    %207 = vector.shape_cast %34 : vector<1x256xi1> to vector<1x256xi1>
    %208 = vector.broadcast %207 : vector<1x256xi1> to vector<8x256xi1>
    %209 = arith.select %208, %205, %206 : vector<8x256xi1>, vector<8x256xf32>
    %210 = arith.truncf %204 : vector<8x64xf32> to vector<8x64xbf16>
    %cst_54 = arith.constant dense<0.000000e+00> : vector<8x256xf32>
    %211 = tpu.matmul %210, %46, %cst_54 {dimension_numbers = #tpu.dot_dimension_numbers<[1], [0], [0], [1], [0, 0, 1, 1], [], []>} : vector<8x64xbf16>, vector<64x256xbf16>, vector<8x256xf32> -> vector<8x256xf32>
    %212 = arith.addf %209, %211 : vector<8x256xf32>
    %213 = arith.negf %212 : vector<8x256xf32>
    %214 = math.exp %213 : vector<8x256xf32>
    %cst_55 = arith.constant 1.000000e+00 : f32
    %215 = vector.broadcast %cst_55 : f32 to vector<8x256xf32>
    %216 = arith.addf %215, %214 : vector<8x256xf32>
    %217 = arith.divf %215, %216 : vector<8x256xf32>
    %218 = vector.broadcast %42 : vector<1x256xf32> to vector<8x256xf32>
    %219 = arith.mulf %217, %218 : vector<8x256xf32>
    %220 = vector.broadcast %45 : vector<1x256xf32> to vector<8x256xf32>
    %221 = arith.addf %219, %220 : vector<8x256xf32>
    %222 = vector.extract_strided_slice %221 {offsets = [0, 0], sizes = [8, 64], strides = [1, 1]} : vector<8x256xf32> to vector<8x64xf32>
    %223 = vector.extract_strided_slice %221 {offsets = [0, 64], sizes = [8, 64], strides = [1, 1]} : vector<8x256xf32> to vector<8x64xf32>
    %224 = vector.extract_strided_slice %221 {offsets = [0, 128], sizes = [8, 64], strides = [1, 1]} : vector<8x256xf32> to vector<8x64xf32>
    %225 = vector.extract_strided_slice %221 {offsets = [0, 192], sizes = [8, 64], strides = [1, 1]} : vector<8x256xf32> to vector<8x64xf32>
    %226 = arith.mulf %223, %202 : vector<8x64xf32>
    %227 = arith.mulf %222, %224 : vector<8x64xf32>
    %228 = arith.addf %226, %227 : vector<8x64xf32>
    %229 = math.tanh %228 : vector<8x64xf32>
    %230 = arith.mulf %225, %229 : vector<8x64xf32>
    %c56_56 = arith.constant 56 : index
    %c0_57 = arith.constant 0 : index
    %231 = vector.load %arg9[%c56_56, %c0_57] : memref<64x256xf32, #tpu.memory_space<vmem>>, vector<8x256xf32>
    %c0_58 = arith.constant 0 : index
    %c0_59 = arith.constant 0 : index
    %232 = vector.load %arg9[%c0_58, %c0_59] : memref<64x256xf32, #tpu.memory_space<vmem>>, vector<8x256xf32>
    %233 = vector.shape_cast %34 : vector<1x256xi1> to vector<1x256xi1>
    %234 = vector.broadcast %233 : vector<1x256xi1> to vector<8x256xi1>
    %235 = arith.select %234, %231, %232 : vector<8x256xi1>, vector<8x256xf32>
    %236 = arith.truncf %230 : vector<8x64xf32> to vector<8x64xbf16>
    %cst_60 = arith.constant dense<0.000000e+00> : vector<8x256xf32>
    %237 = tpu.matmul %236, %46, %cst_60 {dimension_numbers = #tpu.dot_dimension_numbers<[1], [0], [0], [1], [0, 0, 1, 1], [], []>} : vector<8x64xbf16>, vector<64x256xbf16>, vector<8x256xf32> -> vector<8x256xf32>
    %238 = arith.addf %235, %237 : vector<8x256xf32>
    %239 = arith.negf %238 : vector<8x256xf32>
    %240 = math.exp %239 : vector<8x256xf32>
    %cst_61 = arith.constant 1.000000e+00 : f32
    %241 = vector.broadcast %cst_61 : f32 to vector<8x256xf32>
    %242 = arith.addf %241, %240 : vector<8x256xf32>
    %243 = arith.divf %241, %242 : vector<8x256xf32>
    %244 = vector.broadcast %42 : vector<1x256xf32> to vector<8x256xf32>
    %245 = arith.mulf %243, %244 : vector<8x256xf32>
    %246 = vector.broadcast %45 : vector<1x256xf32> to vector<8x256xf32>
    %247 = arith.addf %245, %246 : vector<8x256xf32>
    %248 = vector.extract_strided_slice %247 {offsets = [0, 0], sizes = [8, 64], strides = [1, 1]} : vector<8x256xf32> to vector<8x64xf32>
    %249 = vector.extract_strided_slice %247 {offsets = [0, 64], sizes = [8, 64], strides = [1, 1]} : vector<8x256xf32> to vector<8x64xf32>
    %250 = vector.extract_strided_slice %247 {offsets = [0, 128], sizes = [8, 64], strides = [1, 1]} : vector<8x256xf32> to vector<8x64xf32>
    %251 = vector.extract_strided_slice %247 {offsets = [0, 192], sizes = [8, 64], strides = [1, 1]} : vector<8x256xf32> to vector<8x64xf32>
    %252 = arith.mulf %249, %228 : vector<8x64xf32>
    %253 = arith.mulf %248, %250 : vector<8x64xf32>
    %254 = arith.addf %252, %253 : vector<8x64xf32>
    %255 = math.tanh %254 : vector<8x64xf32>
    %256 = arith.mulf %251, %255 : vector<8x64xf32>
    %257 = arith.truncf %256 : vector<8x64xf32> to vector<8x64xbf16>
    %c0_62 = arith.constant 0 : index
    %c0_63 = arith.constant 0 : index
    %258 = vector.load %arg6[%c0_62, %c0_63] : memref<64x128xbf16, #tpu.memory_space<vmem>>, vector<64x128xbf16>
    %cst_64 = arith.constant dense<0.000000e+00> : vector<8x128xf32>
    %259 = tpu.matmul %257, %258, %cst_64 {dimension_numbers = #tpu.dot_dimension_numbers<[1], [0], [0], [1], [0, 0, 1, 1], [], []>} : vector<8x64xbf16>, vector<64x128xbf16>, vector<8x128xf32> -> vector<8x128xf32>
    %c0_65 = arith.constant 0 : index
    %c0_66 = arith.constant 0 : index
    %260 = vector.load %arg7[%c0_65, %c0_66] : memref<1x128xf32, #tpu.memory_space<vmem>>, vector<1x128xf32>
    %261 = vector.broadcast %260 : vector<1x128xf32> to vector<8x128xf32>
    %262 = arith.addf %259, %261 : vector<8x128xf32>
    %c0_67 = arith.constant 0 : index
    %c0_68 = arith.constant 0 : index
    %263 = vector.load %arg8[%c0_67, %c0_68] : memref<8x128xf32, #tpu.memory_space<vmem>>, vector<8x128xf32>
    tpu.vector_store %arg8[%c0_67, %c0_68], %262 {strides = array<i32>} : memref<8x128xf32, #tpu.memory_space<vmem>>, vector<8x128xf32>,
    return
  }
  func.func @transform_0(%arg0: i32) -> (i32, i32) {
    %c0_i32 = arith.constant 0 : i32
    %c0_i32_0 = arith.constant 0 : i32
    %c0_i32_1 = arith.constant 0 : i32
    return %c0_i32, %c0_i32_0 : i32, i32
  }
  func.func @transform_1(%arg0: i32) -> (i32, i32) {
    %c0_i32 = arith.constant 0 : i32
    %c0_i32_0 = arith.constant 0 : i32
    %c0_i32_1 = arith.constant 0 : i32
    return %c0_i32, %c0_i32_0 : i32, i32
  }
  func.func @transform_2(%arg0: i32) -> (i32, i32) {
    %c0_i32 = arith.constant 0 : i32
    %c0_i32_0 = arith.constant 0 : i32
    %c0_i32_1 = arith.constant 0 : i32
    return %c0_i32, %c0_i32_0 : i32, i32
  }
  func.func @transform_3(%arg0: i32) -> (i32, i32) {
    %c0_i32 = arith.constant 0 : i32
    %c0_i32_0 = arith.constant 0 : i32
    %c0_i32_1 = arith.constant 0 : i32
    return %c0_i32, %c0_i32_0 : i32, i32
  }
  func.func @transform_4(%arg0: i32) -> (i32, i32) {
    %c0_i32 = arith.constant 0 : i32
    %c0_i32_0 = arith.constant 0 : i32
    %c0_i32_1 = arith.constant 0 : i32
    return %c0_i32, %c0_i32_0 : i32, i32
  }
  func.func @transform_5(%arg0: i32) -> (i32, i32) {
    %c0_i32 = arith.constant 0 : i32
    %c0_i32_0 = arith.constant 0 : i32
    %c0_i32_1 = arith.constant 0 : i32
    return %c0_i32, %c0_i32_0 : i32, i32
  }
  func.func @transform_6(%arg0: i32) -> (i32, i32) {
    %c0_i32 = arith.constant 0 : i32
    %c0_i32_0 = arith.constant 0 : i32
    %c0_i32_1 = arith.constant 0 : i32
    return %c0_i32, %c0_i32_0 : i32, i32
  }
  func.func @transform_7(%arg0: i32) -> (i32, i32) {
    %c0_i32 = arith.constant 0 : i32
    %c0_i32_0 = arith.constant 0 : i32
    %c0_i32_1 = arith.constant 0 : i32
    return %c0_i32, %c0_i32_0 : i32, i32
  }
}

</mosaic_0001>

<llo_original>
// kernel: intent_model_forward.1
$region0: #{intent_model_forward.1}
  #allocation0 [shape = 'u32[]', space=smem, size = 0x4, offset = 0x4, fixed_abs, tag = 'smem constant byte address 0x4 - core index']
  #allocation1 [shape = 'u32[144,128]{1,0:T(1,128)}', space=vmem, size = 0x12000, scoped, tag = 'internal scratch']
  #allocation2 [shape = 'f32[64,256]{1,0:T(8,128)}', space=vmem, size = 0x10000, scoped, tag = 'scratch operand']
  %s0 = inlined_call_operand.vmem [shape: s32[64,1], index: 0, kind: input, shape index: {}]
  %s1 = inlined_call_operand.vmem [shape: bf16[128,32], index: 1, kind: input, shape index: {}]
  %s2 = inlined_call_operand.vmem [shape: bf16[32,256], index: 2, kind: input, shape index: {}]
  %s3 = inlined_call_operand.vmem [shape: f32[1,256], index: 3, kind: input, shape index: {}]
  %s4 = inlined_call_operand.vmem [shape: bf16[64,256], index: 4, kind: input, shape index: {}]
  %s5 = inlined_call_operand.vmem [shape: bf16[64,128], index: 5, kind: input, shape index: {}]
  %s6 = inlined_call_operand.vmem [shape: f32[1,128], index: 6, kind: input, shape index: {}]
  %s7 = inlined_call_operand.vmem [shape: f32[8,128], index: 7, kind: output, shape index: {}]
  %s8 = sld [smem:[#allocation0]]
  $region38: #{intent_model_forward.1} parent=0
    _
  %s10 = ssub.s32 1, %s8
  %s11 = scalar_select 0, %s10, %s8
  // Predicated region
  $region2: #{intent_model_forward.1} parent=0 // pred_check
    _
  $region3: #{intent_model_forward.1} parent=0 // pred_check_branch
    %13 = sbr.rel (0) target = $region5
  $region4: #{intent_model_forward.1} parent=0 // pred_region
    _
  $region5: #{intent_model_forward.1} parent=0 // pred_fallthru
    _
  // Predicated region
  $region6: #{intent_model_forward.1} parent=0 // pred_check
    _
  $region7: #{intent_model_forward.1} parent=0 // pred_check_branch
    %15 = sbr.rel (0) target = $region9
  $region8: #{intent_model_forward.1} parent=0 // pred_region
    _
  $region9: #{intent_model_forward.1} parent=0 // pred_fallthru
    _
  // Predicated region
  $region10: #{intent_model_forward.1} parent=0 // pred_check
    _
  $region11: #{intent_model_forward.1} parent=0 // pred_check_branch
    %17 = sbr.rel (0) target = $region13
  $region12: #{intent_model_forward.1} parent=0 // pred_region
    _
  $region13: #{intent_model_forward.1} parent=0 // pred_fallthru
    _
  // Predicated region
  $region14: #{intent_model_forward.1} parent=0 // pred_check
    _
  $region15: #{intent_model_forward.1} parent=0 // pred_check_branch
    %19 = sbr.rel (0) target = $region17
  $region16: #{intent_model_forward.1} parent=0 // pred_region
    _
  $region17: #{intent_model_forward.1} parent=0 // pred_fallthru
    _
  // Predicated region
  $region18: #{intent_model_forward.1} parent=0 // pred_check
    _
  $region19: #{intent_model_forward.1} parent=0 // pred_check_branch
    %21 = sbr.rel (0) target = $region21
  $region20: #{intent_model_forward.1} parent=0 // pred_region
    _
  $region21: #{intent_model_forward.1} parent=0 // pred_fallthru
    _
  // Predicated region
  $region22: #{intent_model_forward.1} parent=0 // pred_check
    _
  $region23: #{intent_model_forward.1} parent=0 // pred_check_branch
    %23 = sbr.rel (0) target = $region25
  $region24: #{intent_model_forward.1} parent=0 // pred_region
    _
  $region25: #{intent_model_forward.1} parent=0 // pred_fallthru
    _
  // Predicated region
  $region26: #{intent_model_forward.1} parent=0 // pred_check
    _
  $region27: #{intent_model_forward.1} parent=0 // pred_check_branch
    %25 = sbr.rel (0) target = $region29
  $region28: #{intent_model_forward.1} parent=0 // pred_region
    _
  $region29: #{intent_model_forward.1} parent=0 // pred_fallthru
    _
  %v27 = vld [vmem:[%s0] sm:$0xff]
  %v28 = vld [vmem:[%s0 + $0x8] sm:$0xff]
  %v29 = vld [vmem:[%s0 + $0x10] sm:$0xff]
  %v30 = vld [vmem:[%s0 + $0x18] sm:$0xff]
  %v31 = vld [vmem:[%s0 + $0x20] sm:$0xff]
  %v32 = vld [vmem:[%s0 + $0x28] sm:$0xff]
  %v33 = vld [vmem:[%s0 + $0x30] sm:$0xff]
  %v34 = vld [vmem:[%s0 + $0x38] sm:$0xff]
  %v35 = vlaneseq
  %v36 = vand.u32 %v35, 127
  %37 = vset.pattern.permute.xlu0 0
  %38 = vperm.xlu0 %37, %v27
  %v39 = vpop.permute.xlu0 %38
  %40 = vset.pattern.permute.xlu0 0
  %41 = vperm.xlu0 %40, %v28
  %v42 = vpop.permute.xlu0 %41
  %43 = vset.pattern.permute.xlu0 0
  %44 = vperm.xlu0 %43, %v29
  %v45 = vpop.permute.xlu0 %44
  %46 = vset.pattern.permute.xlu0 0
  %47 = vperm.xlu0 %46, %v30
  %v48 = vpop.permute.xlu0 %47
  %49 = vset.pattern.permute.xlu0 0
  %50 = vperm.xlu0 %49, %v31
  %v51 = vpop.permute.xlu0 %50
  %52 = vset.pattern.permute.xlu0 0
  %53 = vperm.xlu0 %52, %v32
  %v54 = vpop.permute.xlu0 %53
  %55 = vset.pattern.permute.xlu0 0
  %56 = vperm.xlu0 %55, %v33
  %v57 = vpop.permute.xlu0 %56
  %58 = vset.pattern.permute.xlu0 0
  %59 = vperm.xlu0 %58, %v34
  %v60 = vpop.permute.xlu0 %59
  %vm61 = vcmp.eq.s32.totalorder %v39, %v36
  %vm62 = vcmp.eq.s32.totalorder %v42, %v36
  %vm63 = vcmp.eq.s32.totalorder %v45, %v36
  %vm64 = vcmp.eq.s32.totalorder %v48, %v36
  %vm65 = vcmp.eq.s32.totalorder %v51, %v36
  %vm66 = vcmp.eq.s32.totalorder %v54, %v36
  %vm67 = vcmp.eq.s32.totalorder %v57, %v36
  %vm68 = vcmp.eq.s32.totalorder %v60, %v36
  %v69 = vsel %vm61, 1, 0
  %v70 = vsel %vm62, 1, 0
  %v71 = vsel %vm63, 1, 0
  %v72 = vsel %vm64, 1, 0
  %v73 = vsel %vm65, 1, 0
  %v74 = vsel %vm66, 1, 0
  %v75 = vsel %vm67, 1, 0
  %v76 = vsel %vm68, 1, 0
  %v77 = vcvt.s32.f32 %v69
  %v78 = vcvt.s32.f32 %v70
  %v79 = vcvt.s32.f32 %v71
  %v80 = vcvt.s32.f32 %v72
  %v81 = vcvt.s32.f32 %v73
  %v82 = vcvt.s32.f32 %v74
  %v83 = vcvt.s32.f32 %v75
  %v84 = vcvt.s32.f32 %v76
  %v85 = vpack.c.bf16 %v78, %v77
  %v86 = vpack.c.bf16 %v80, %v79
  %v87 = vpack.c.bf16 %v82, %v81
  %v88 = vpack.c.bf16 %v84, %v83
  %v89 = vld [vmem:[%s1] sm:$0xf]
  %v90 = vld [vmem:[%s1 + $0x4] sm:$0xf]
  %v91 = vld [vmem:[%s1 + $0x8] sm:$0xf]
  %v92 = vld [vmem:[%s1 + $0xc] sm:$0xf]
  %v93 = vld [vmem:[%s1 + $0x10] sm:$0xf]
  %v94 = vld [vmem:[%s1 + $0x14] sm:$0xf]
  %v95 = vld [vmem:[%s1 + $0x18] sm:$0xf]
  %v96 = vld [vmem:[%s1 + $0x1c] sm:$0xf]
  %v97 = vld [vmem:[%s1 + $0x20] sm:$0xf]
  %v98 = vld [vmem:[%s1 + $0x24] sm:$0xf]
  %v99 = vld [vmem:[%s1 + $0x28] sm:$0xf]
  %v100 = vld [vmem:[%s1 + $0x2c] sm:$0xf]
  %v101 = vld [vmem:[%s1 + $0x30] sm:$0xf]
  %v102 = vld [vmem:[%s1 + $0x34] sm:$0xf]
  %v103 = vld [vmem:[%s1 + $0x38] sm:$0xf]
  %v104 = vld [vmem:[%s1 + $0x3c] sm:$0xf]
  %v121 = vunpack.c.l.b16 %v89
  %v122 = vunpack.c.l.b16 %v90
  %v123 = vunpack.c.l.b16 %v91
  %v124 = vunpack.c.l.b16 %v92
  %v125 = vunpack.c.l.b16 %v93
  %v126 = vunpack.c.l.b16 %v94
  %v127 = vunpack.c.l.b16 %v95
  %v128 = vunpack.c.l.b16 %v96
  %v129 = vunpack.c.l.b16 %v97
  %v130 = vunpack.c.l.b16 %v98
  %v131 = vunpack.c.l.b16 %v99
  %v132 = vunpack.c.l.b16 %v100
  %v133 = vunpack.c.l.b16 %v101
  %v134 = vunpack.c.l.b16 %v102
  %v135 = vunpack.c.l.b16 %v103
  %v136 = vunpack.c.l.b16 %v104
  %v137 = vpack.c.b16 %v122, %v121
  %v138 = vpack.c.b16 %v124, %v123
  %v139 = vpack.c.b16 %v126, %v125
  %v140 = vpack.c.b16 %v128, %v127
  %v141 = vpack.c.b16 %v130, %v129
  %v142 = vpack.c.b16 %v132, %v131
  %v143 = vpack.c.b16 %v134, %v133
  %v144 = vpack.c.b16 %v136, %v135
  %153 = vmatprep.subr.bf16.mxu0 0
  %154 = vmatpush1.bf16.msra.mxu0 %v137
  %155 = vmatprep.subr.bf16.mxu0 0
  %156 = vmatpush1.bf16.msra.mxu0 %v138
  %157 = vmatprep.subr.bf16.mxu0 0
  %158 = vmatpush1.bf16.msra.mxu0 %v139
  %159 = vmatprep.subr.bf16.mxu0 0
  %160 = vmatpush1.bf16.msra.mxu0 %v140
  %161 = vmatprep.subr.bf16.mxu0 0
  %162 = vmatpush1.bf16.msra.mxu0 %v141
  %163 = vmatprep.subr.bf16.mxu0 0
  %164 = vmatpush1.bf16.msra.mxu0 %v142
  %165 = vmatprep.subr.bf16.mxu0 0
  %166 = vmatpush1.bf16.msra.mxu0 %v143
  %167 = vmatprep.subr.bf16.mxu0 0
  %168 = vmatpush1.bf16.msra.mxu0 %v144
  %169 = vmatprep.subr.bf16.mxu0 0
  %170 = vmatpush1.bf16.msra.mxu0 0
  %171 = vmatprep.subr.bf16.mxu0 0
  %172 = vmatpush1.bf16.msra.mxu0 0
  %173 = vmatprep.subr.bf16.mxu0 0
  %174 = vmatpush1.bf16.msra.mxu0 0
  %175 = vmatprep.subr.bf16.mxu0 0
  %176 = vmatpush1.bf16.msra.mxu0 0
  %177 = vmatprep.subr.bf16.mxu0 0
  %178 = vmatpush1.bf16.msra.mxu0 0
  %179 = vmatprep.subr.bf16.mxu0 0
  %180 = vmatpush1.bf16.msra.mxu0 0
  %181 = vmatprep.subr.bf16.mxu0 0
  %182 = vmatpush1.bf16.msra.mxu0 0
  %183 = vmatprep.subr.bf16.mxu0 0
  %184 = vmatpush1.bf16.msra.mxu0 0
  %185 = vmatprep.mubr.bf16.mxu0 0
  %186 = vmatmul.mubr.bf16.gmra.mrb[0].mxu0 %v85
  %v187 = vpop.f32.mrb[0].mxu0
  %v188 = vadd.f32 0.0, %v187
  %v189 = vpop.f32.mrb[0].mxu0
  %v190 = vpop.f32.mrb[0].mxu0
  %v191 = vadd.f32 0.0, %v190
  %v192 = vpop.f32.mrb[0].mxu0
  %193 = vmatprep.mubr.bf16.mxu0 0
  %194 = vmatmul.mubr.bf16.gmra.mrb[0].mxu0 %v86
  %v195 = vpop.f32.mrb[0].mxu0
  %v196 = vadd.f32 0.0, %v195
  %v197 = vpop.f32.mrb[0].mxu0
  %v198 = vpop.f32.mrb[0].mxu0
  %v199 = vadd.f32 0.0, %v198
  %v200 = vpop.f32.mrb[0].mxu0
  %201 = vmatprep.mubr.bf16.mxu0 0
  %202 = vmatmul.mubr.bf16.gmra.mrb[0].mxu0 %v87
  %v203 = vpop.f32.mrb[0].mxu0
  %v204 = vadd.f32 0.0, %v203
  %v205 = vpop.f32.mrb[0].mxu0
  %v206 = vpop.f32.mrb[0].mxu0
  %v207 = vadd.f32 0.0, %v206
  %v208 = vpop.f32.mrb[0].mxu0
  %209 = vmatprep.mubr.bf16.mxu0 0
  %210 = vmatmul.mubr.bf16.gmra.mrb[0].mxu0 %v88
  %v211 = vpop.f32.mrb[0].mxu0
  %v212 = vadd.f32 0.0, %v211
  %v213 = vpop.f32.mrb[0].mxu0
  %v214 = vpop.f32.mrb[0].mxu0
  %v215 = vadd.f32 0.0, %v214
  %v216 = vpop.f32.mrb[0].mxu0
  %217 = vdwg.mxu0
  %v218 = vpack.c.bf16 %v191, %v188
  %v219 = vpack.c.bf16 %v199, %v196
  %v220 = vpack.c.bf16 %v207, %v204
  %v221 = vpack.c.bf16 %v215, %v212
  %v222 = vld [vmem:[%s2] sm:$0xff]
  %v223 = vld [vmem:[%s2 + $0x8] sm:$0xff]
  %v224 = vld [vmem:[%s2 + $0x10] sm:$0xff]
  %v225 = vld [vmem:[%s2 + $0x18] sm:$0xff]
  %v226 = vld [vmem:[%s3] sm:$0x3]
  %v228 = vlaneseq
  %v229 = vshrl.u32 %v228, 7
  %v230 = vsub.s32 0, %v229
  %v231 = vrot.slane %v226, %v230
  %v232 = vlaneseq
  %v233 = vshrl.u32 %v232, 7
  %v234 = vsub.s32 1, %v233
  %v235 = vrot.slane %v226, %v234
  %v242 = vunpack.c.l.b16 %v222
  %v243 = vunpack.c.h.b16 %v222
  %v244 = vunpack.c.l.b16 %v223
  %v245 = vunpack.c.h.b16 %v223
  %v246 = vunpack.c.l.b16 %v224
  %v247 = vunpack.c.h.b16 %v224
  %v248 = vunpack.c.l.b16 %v225
  %v249 = vunpack.c.h.b16 %v225
  %v250 = vpack.c.b16 %v244, %v242
  %v251 = vpack.c.b16 %v245, %v243
  %v252 = vpack.c.b16 %v248, %v246
  %v253 = vpack.c.b16 %v249, %v247
  %vm258 = vcmask 261120
  %v260 = vsel %vm258, %v218, 0
  %v263 = vsel %vm258, %v219, 0
  %v266 = vsel %vm258, %v220, 0
  %v269 = vsel %vm258, %v221, 0
  %271 = vmatprep.subr.bf16.mxu0 %v251
  %272 = vmatpush1.bf16.msra.mxu0 %v250
  %273 = vmatprep.subr.bf16.mxu0 %v253
  %274 = vmatpush1.bf16.msra.mxu0 %v252
  %275 = vmatprep.subr.bf16.mxu0 0
  %276 = vmatpush1.bf16.msra.mxu0 0
  %277 = vmatprep.subr.bf16.mxu0 0
  %278 = vmatpush1.bf16.msra.mxu0 0
  %279 = vmatprep.subr.bf16.mxu0 0
  %280 = vmatpush1.bf16.msra.mxu0 0
  %281 = vmatprep.subr.bf16.mxu0 0
  %282 = vmatpush1.bf16.msra.mxu0 0
  %283 = vmatprep.subr.bf16.mxu0 0
  %284 = vmatpush1.bf16.msra.mxu0 0
  %285 = vmatprep.subr.bf16.mxu0 0
  %286 = vmatpush1.bf16.msra.mxu0 0
  %287 = vmatprep.subr.bf16.mxu0 0
  %288 = vmatpush1.bf16.msra.mxu0 0
  %289 = vmatprep.subr.bf16.mxu0 0
  %290 = vmatpush1.bf16.msra.mxu0 0
  %291 = vmatprep.subr.bf16.mxu0 0
  %292 = vmatpush1.bf16.msra.mxu0 0
  %293 = vmatprep.subr.bf16.mxu0 0
  %294 = vmatpush1.bf16.msra.mxu0 0
  %295 = vmatprep.subr.bf16.mxu0 0
  %296 = vmatpush1.bf16.msra.mxu0 0
  %297 = vmatprep.subr.bf16.mxu0 0
  %298 = vmatpush1.bf16.msra.mxu0 0
  %299 = vmatprep.subr.bf16.mxu0 0
  %300 = vmatpush1.bf16.msra.mxu0 0
  %301 = vmatprep.subr.bf16.mxu0 0
  %302 = vmatpush1.bf16.msra.mxu0 0
  %303 = vmatprep.mubr.bf16.mxu0 0
  %304 = vmatmul.mubr.bf16.gmra.mrb[0].mxu0 %v260
  %v305 = vpop.f32.mrb[0].mxu0
  %v306 = vadd.f32 %v231, %v305
  %v307 = vpop.f32.mrb[0].mxu0
  %v308 = vadd.f32 %v235, %v307
  %v309 = vpop.f32.mrb[0].mxu0
  %v310 = vadd.f32 %v231, %v309
  %v311 = vpop.f32.mrb[0].mxu0
  %v312 = vadd.f32 %v235, %v311
  %313 = vmatprep.mubr.bf16.mxu0 0
  %314 = vmatmul.mubr.bf16.gmra.mrb[0].mxu0 %v263
  %v315 = vpop.f32.mrb[0].mxu0
  %v316 = vadd.f32 %v231, %v315
  %v317 = vpop.f32.mrb[0].mxu0
  %v318 = vadd.f32 %v235, %v317
  %v319 = vpop.f32.mrb[0].mxu0
  %v320 = vadd.f32 %v231, %v319
  %v321 = vpop.f32.mrb[0].mxu0
  %v322 = vadd.f32 %v235, %v321
  %323 = vmatprep.mubr.bf16.mxu0 0
  %324 = vmatmul.mubr.bf16.gmra.mrb[0].mxu0 %v266
  %v325 = vpop.f32.mrb[0].mxu0
  %v326 = vadd.f32 %v231, %v325
  %v327 = vpop.f32.mrb[0].mxu0
  %v328 = vadd.f32 %v235, %v327
  %v329 = vpop.f32.mrb[0].mxu0
  %v330 = vadd.f32 %v231, %v329
  %v331 = vpop.f32.mrb[0].mxu0
  %v332 = vadd.f32 %v235, %v331
  %333 = vmatprep.mubr.bf16.mxu0 0
  %334 = vmatmul.mubr.bf16.gmra.mrb[0].mxu0 %v269
  %v335 = vpop.f32.mrb[0].mxu0
  %v336 = vadd.f32 %v231, %v335
  %v337 = vpop.f32.mrb[0].mxu0
  %v338 = vadd.f32 %v235, %v337
  %v339 = vpop.f32.mrb[0].mxu0
  %v340 = vadd.f32 %v231, %v339
  %v341 = vpop.f32.mrb[0].mxu0
  %v342 = vadd.f32 %v235, %v341
  %343 = vdwg.mxu0
  %344 = vst [vmem:[#allocation2] sm:$0xff] %v306
  %345 = vst [vmem:[#allocation2 + $0x8] sm:$0xff] %v308
  %346 = vst [vmem:[#allocation2 + $0x10] sm:$0xff] %v310
  %347 = vst [vmem:[#allocation2 + $0x18] sm:$0xff] %v312
  %348 = vst [vmem:[#allocation2 + $0x20] sm:$0xff] %v316
  %349 = vst [vmem:[#allocation2 + $0x28] sm:$0xff] %v318
  %350 = vst [vmem:[#allocation2 + $0x30] sm:$0xff] %v320
  %351 = vst [vmem:[#allocation2 + $0x38] sm:$0xff] %v322
  %352 = vst [vmem:[#allocation2 + $0x40] sm:$0xff] %v326
  %353 = vst [vmem:[#allocation2 + $0x48] sm:$0xff] %v328
  %354 = vst [vmem:[#allocation2 + $0x50] sm:$0xff] %v330
  %355 = vst [vmem:[#allocation2 + $0x58] sm:$0xff] %v332
  %356 = vst [vmem:[#allocation2 + $0x60] sm:$0xff] %v336
  %357 = vst [vmem:[#allocation2 + $0x68] sm:$0xff] %v338
  %358 = vst [vmem:[#allocation2 + $0x70] sm:$0xff] %v340
  %359 = vst [vmem:[#allocation2 + $0x78] sm:$0xff] %v342
  %v360 = vadd.s32 %v36, 128
  %vm361 = vcmp.lt.s32.totalorder %v36, 0
  %v362 = vsub.s32 0, %v36
  %v363 = vsel %vm361, %v362, %v36
  %v364 = vshrl.u32 %v363, 6
  %v365 = vand.u32 %v363, 63
  %v366 = vsub.s32 0, %v365
  %v367 = vsel %vm361, %v366, %v365
  %vm368 = vcmp.lt.s32.totalorder %v360, 0
  %v369 = vsub.s32 0, %v360
  %v370 = vsel %vm368, %v369, %v360
  %v371 = vshrl.u32 %v370, 6
  %v372 = vand.u32 %v370, 63
  %v373 = vsub.s32 0, %v372
  %v374 = vsel %vm368, %v373, %v372
  %vm375 = vcmp.ne.s32.totalorder %v367, 0
  %vm376 = vcmp.ne.s32.totalorder %v374, 0
  %vm377 = vcmp.lt.s32.totalorder %v367, 0
  %vm378 = vcmp.lt.s32.totalorder %v374, 0
  %vm379 = vmand %vm377, %vm375
  %vm380 = vmand %vm378, %vm376
  %v381 = vadd.s32 %v367, 64
  %v382 = vadd.s32 %v374, 64
  %v383 = vsel %vm379, %v381, %v367
  %v384 = vsel %vm380, %v382, %v374
  %vm385 = vcmp.lt.s32.totalorder %v383, 32
  %vm386 = vcmp.lt.s32.totalorder %v384, 32
  %vm387 = vcmp.ge.s32.totalorder %v36, 128
  %vm388 = vcmp.ge.s32.totalorder %v360, 128
  %vm389 = vcmp.lt.s32.totalorder %v36, 192
  %vm390 = vcmp.lt.s32.totalorder %v360, 192
  %vm391 = vmand %vm387, %vm389
  %vm392 = vmand %vm388, %vm390
  %v393 = vsel %vm391, 2.0, 1.0
  %v394 = vsel %vm392, 2.0, 1.0
  %v395 = vsel %vm391, -1.0, 0.0
  %v396 = vsel %vm392, -1.0, 0.0
  %v397 = vld [vmem:[%s4] sm:$0xff]
  %v398 = vld [vmem:[%s4 + $0x8] sm:$0xff]
  %v399 = vld [vmem:[%s4 + $0x10] sm:$0xff]
  %v400 = vld [vmem:[%s4 + $0x18] sm:$0xff]
  %v401 = vld [vmem:[%s4 + $0x20] sm:$0xff]
  %v402 = vld [vmem:[%s4 + $0x28] sm:$0xff]
  %v403 = vld [vmem:[%s4 + $0x30] sm:$0xff]
  %v404 = vld [vmem:[%s4 + $0x38] sm:$0xff]
  %v405 = vld [vmem:[#allocation2] sm:$0xff]
  %v406 = vld [vmem:[#allocation2 + $0x8] sm:$0xff]
  %v407 = vld [vmem:[#allocation2 + $0x70] sm:$0xff]
  %v408 = vld [vmem:[#allocation2 + $0x78] sm:$0xff]
  %v409 = vsel %vm385, 1, 0
  %v410 = vsel %vm386, 1, 0
  %vm411 = vcmp.eq.s32.totalorder %v409, 1
  %vm412 = vcmp.eq.s32.totalorder %v410, 1
  %v413 = vsel %vm411, %v405, %v407
  %v414 = vsel %vm412, %v406, %v408
  %v423 = vunpack.c.l.b16 %v397
  %v424 = vunpack.c.h.b16 %v397
  %v425 = vunpack.c.l.b16 %v398
  %v426 = vunpack.c.h.b16 %v398
  %v427 = vunpack.c.l.b16 %v399
  %v428 = vunpack.c.h.b16 %v399
  %v429 = vunpack.c.l.b16 %v400
  %v430 = vunpack.c.h.b16 %v400
  %v431 = vunpack.c.l.b16 %v401
  %v432 = vunpack.c.h.b16 %v401
  %v433 = vunpack.c.l.b16 %v402
  %v434 = vunpack.c.h.b16 %v402
  %v435 = vunpack.c.l.b16 %v403
  %v436 = vunpack.c.h.b16 %v403
  %v437 = vunpack.c.l.b16 %v404
  %v438 = vunpack.c.h.b16 %v404
  %v439 = vpack.c.b16 %v425, %v423
  %v440 = vpack.c.b16 %v426, %v424
  %v441 = vpack.c.b16 %v429, %v427
  %v442 = vpack.c.b16 %v430, %v428
  %v443 = vpack.c.b16 %v433, %v431
  %v444 = vpack.c.b16 %v434, %v432
  %v445 = vpack.c.b16 %v437, %v435
  %v446 = vpack.c.b16 %v438, %v436
  %vm455 = vcmask 523264
  %v457 = vsel %vm455, 0, 0
  %459 = vmatprep.subr.bf16.mxu0 %v440
  %460 = vmatpush1.bf16.msra.mxu0 %v439
  %461 = vmatprep.subr.bf16.mxu0 %v442
  %462 = vmatpush1.bf16.msra.mxu0 %v441
  %463 = vmatprep.subr.bf16.mxu0 %v444
  %464 = vmatpush1.bf16.msra.mxu0 %v443
  %465 = vmatprep.subr.bf16.mxu0 %v446
  %466 = vmatpush1.bf16.msra.mxu0 %v445
  %467 = vmatprep.subr.bf16.mxu0 0
  %468 = vmatpush1.bf16.msra.mxu0 0
  %469 = vmatprep.subr.bf16.mxu0 0
  %470 = vmatpush1.bf16.msra.mxu0 0
  %471 = vmatprep.subr.bf16.mxu0 0
  %472 = vmatpush1.bf16.msra.mxu0 0
  %473 = vmatprep.subr.bf16.mxu0 0
  %474 = vmatpush1.bf16.msra.mxu0 0
  %475 = vmatprep.subr.bf16.mxu0 0
  %476 = vmatpush1.bf16.msra.mxu0 0
  %477 = vmatprep.subr.bf16.mxu0 0
  %478 = vmatpush1.bf16.msra.mxu0 0
  %479 = vmatprep.subr.bf16.mxu0 0
  %480 = vmatpush1.bf16.msra.mxu0 0
  %481 = vmatprep.subr.bf16.mxu0 0
  %482 = vmatpush1.bf16.msra.mxu0 0
  %483 = vmatprep.subr.bf16.mxu0 0
  %484 = vmatpush1.bf16.msra.mxu0 0
  %485 = vmatprep.subr.bf16.mxu0 0
  %486 = vmatpush1.bf16.msra.mxu0 0
  %487 = vmatprep.subr.bf16.mxu0 0
  %488 = vmatpush1.bf16.msra.mxu0 0
  %489 = vmatprep.subr.bf16.mxu0 0
  %490 = vmatpush1.bf16.msra.mxu0 0
  %491 = vmatprep.mubr.bf16.mxu0 0
  %492 = vmatmul.mubr.bf16.gmra.mrb[0].mxu0 %v457
  %v493 = vpop.f32.mrb[0].mxu0
  %v494 = vadd.f32 0.0, %v493
  %v495 = vpop.f32.mrb[0].mxu0
  %v496 = vadd.f32 0.0, %v495
  %v497 = vpop.f32.mrb[0].mxu0
  %v498 = vpop.f32.mrb[0].mxu0
  %499 = vdwg.mxu0
  %v500 = vadd.f32 %v413, %v494
  %v501 = vadd.f32 %v414, %v496
  %v502 = vxor.u32 %v500, 2147483648
  %v503 = vxor.u32 %v501, 2147483648
  %v504 = vmul.f32 %v502, 1.442695
  %v505 = vpow.pop %v504
  %v506 = vmul.f32 %v503, 1.442695
  %v507 = vpow.pop %v506
  %v508 = vadd.f32 %v505, 1.0
  %v509 = vadd.f32 %v507, 1.0
  %v510 = vrcp.pop %v508
  %v511 = vmul.f32 1.0, %v510
  %v512 = vrcp.pop %v509
  %v513 = vmul.f32 1.0, %v512
  %v514 = vmul.f32 %v511, %v393
  %v515 = vmul.f32 %v513, %v394
  %v516 = vadd.f32 %v514, %v395
  %v517 = vadd.f32 %v515, %v396
  %v518 = vmul.f32 %v516, 0.0
  %v519 = vmul.f32 %v516, %v517
  %521 = vrot.lane.b32.xlu0 %v519, 64
  %v522 = vpop.permute.xlu0 %521
  %v524 = vadd.f32 %v518, %v522
  %v525 = vtanh.pop %v524
  %v526 = vmul.f32 %v517, %v525
  %v527 = vld [vmem:[#allocation2 + $0x10] sm:$0xff]
  %v528 = vld [vmem:[#allocation2 + $0x18] sm:$0xff]
  %v529 = vld [vmem:[#allocation2 + $0x60] sm:$0xff]
  %v530 = vld [vmem:[#allocation2 + $0x68] sm:$0xff]
  %v531 = vsel %vm411, %v527, %v529
  %v532 = vsel %vm412, %v528, %v530
  %v533 = vpack.c.bf16 %v526, %v526
  %535 = vrot.lane.b32.xlu0 %v533, 64
  %v536 = vpop.permute.xlu0 %535
  %v538 = vsel %vm455, %v536, 0
  %540 = vmatprep.subr.bf16.mxu0 %v440
  %541 = vmatpush1.bf16.msra.mxu0 %v439
  %542 = vmatprep.subr.bf16.mxu0 %v442
  %543 = vmatpush1.bf16.msra.mxu0 %v441
  %544 = vmatprep.subr.bf16.mxu0 %v444
  %545 = vmatpush1.bf16.msra.mxu0 %v443
  %546 = vmatprep.subr.bf16.mxu0 %v446
  %547 = vmatpush1.bf16.msra.mxu0 %v445
  %548 = vmatprep.subr.bf16.mxu0 0
  %549 = vmatpush1.bf16.msra.mxu0 0
  %550 = vmatprep.subr.bf16.mxu0 0
  %551 = vmatpush1.bf16.msra.mxu0 0
  %552 = vmatprep.subr.bf16.mxu0 0
  %553 = vmatpush1.bf16.msra.mxu0 0
  %554 = vmatprep.subr.bf16.mxu0 0
  %555 = vmatpush1.bf16.msra.mxu0 0
  %556 = vmatprep.subr.bf16.mxu0 0
  %557 = vmatpush1.bf16.msra.mxu0 0
  %558 = vmatprep.subr.bf16.mxu0 0
  %559 = vmatpush1.bf16.msra.mxu0 0
  %560 = vmatprep.subr.bf16.mxu0 0
  %561 = vmatpush1.bf16.msra.mxu0 0
  %562 = vmatprep.subr.bf16.mxu0 0
  %563 = vmatpush1.bf16.msra.mxu0 0
  %564 = vmatprep.subr.bf16.mxu0 0
  %565 = vmatpush1.bf16.msra.mxu0 0
  %566 = vmatprep.subr.bf16.mxu0 0
  %567 = vmatpush1.bf16.msra.mxu0 0
  %568 = vmatprep.subr.bf16.mxu0 0
  %569 = vmatpush1.bf16.msra.mxu0 0
  %570 = vmatprep.subr.bf16.mxu0 0
  %571 = vmatpush1.bf16.msra.mxu0 0
  %572 = vmatprep.mubr.bf16.mxu0 0
  %573 = vmatmul.mubr.bf16.gmra.mrb[0].mxu0 %v538
  %v574 = vpop.f32.mrb[0].mxu0
  %v575 = vadd.f32 0.0, %v574
  %v576 = vpop.f32.mrb[0].mxu0
  %v577 = vadd.f32 0.0, %v576
  %v578 = vpop.f32.mrb[0].mxu0
  %v579 = vpop.f32.mrb[0].mxu0
  %580 = vdwg.mxu0
  %v581 = vadd.f32 %v531, %v575
  %v582 = vadd.f32 %v532, %v577
  %v583 = vxor.u32 %v581, 2147483648
  %v584 = vxor.u32 %v582, 2147483648
  %v585 = vmul.f32 %v583, 1.442695
  %v586 = vpow.pop %v585
  %v587 = vmul.f32 %v584, 1.442695
  %v588 = vpow.pop %v587
  %v589 = vadd.f32 %v586, 1.0
  %v590 = vadd.f32 %v588, 1.0
  %v591 = vrcp.pop %v589
  %v592 = vmul.f32 1.0, %v591
  %v593 = vrcp.pop %v590
  %v594 = vmul.f32 1.0, %v593
  %v595 = vmul.f32 %v592, %v393
  %v596 = vmul.f32 %v594, %v394
  %v597 = vadd.f32 %v595, %v395
  %v598 = vadd.f32 %v596, %v396
  %v599 = vmul.f32 %v597, %v524
  %v600 = vmul.f32 %v597, %v598
  %602 = vrot.lane.b32.xlu0 %v600, 64
  %v603 = vpop.permute.xlu0 %602
  %v605 = vadd.f32 %v599, %v603
  %v606 = vtanh.pop %v605
  %v607 = vmul.f32 %v598, %v606
  %v608 = vld [vmem:[#allocation2 + $0x20] sm:$0xff]
  %v609 = vld [vmem:[#allocation2 + $0x28] sm:$0xff]
  %v610 = vld [vmem:[#allocation2 + $0x50] sm:$0xff]
  %v611 = vld [vmem:[#allocation2 + $0x58] sm:$0xff]
  %v612 = vsel %vm411, %v608, %v610
  %v613 = vsel %vm412, %v609, %v611
  %v614 = vpack.c.bf16 %v607, %v607
  %616 = vrot.lane.b32.xlu0 %v614, 64
  %v617 = vpop.permute.xlu0 %616
  %v619 = vsel %vm455, %v617, 0
  %621 = vmatprep.subr.bf16.mxu0 %v440
  %622 = vmatpush1.bf16.msra.mxu0 %v439
  %623 = vmatprep.subr.bf16.mxu0 %v442
  %624 = vmatpush1.bf16.msra.mxu0 %v441
  %625 = vmatprep.subr.bf16.mxu0 %v444
  %626 = vmatpush1.bf16.msra.mxu0 %v443
  %627 = vmatprep.subr.bf16.mxu0 %v446
  %628 = vmatpush1.bf16.msra.mxu0 %v445
  %629 = vmatprep.subr.bf16.mxu0 0
  %630 = vmatpush1.bf16.msra.mxu0 0
  %631 = vmatprep.subr.bf16.mxu0 0
  %632 = vmatpush1.bf16.msra.mxu0 0
  %633 = vmatprep.subr.bf16.mxu0 0
  %634 = vmatpush1.bf16.msra.mxu0 0
  %635 = vmatprep.subr.bf16.mxu0 0
  %636 = vmatpush1.bf16.msra.mxu0 0
  %637 = vmatprep.subr.bf16.mxu0 0
  %638 = vmatpush1.bf16.msra.mxu0 0
  %639 = vmatprep.subr.bf16.mxu0 0
  %640 = vmatpush1.bf16.msra.mxu0 0
  %641 = vmatprep.subr.bf16.mxu0 0
  %642 = vmatpush1.bf16.msra.mxu0 0
  %643 = vmatprep.subr.bf16.mxu0 0
  %644 = vmatpush1.bf16.msra.mxu0 0
  %645 = vmatprep.subr.bf16.mxu0 0
  %646 = vmatpush1.bf16.msra.mxu0 0
  %647 = vmatprep.subr.bf16.mxu0 0
  %648 = vmatpush1.bf16.msra.mxu0 0
  %649 = vmatprep.subr.bf16.mxu0 0
  %650 = vmatpush1.bf16.msra.mxu0 0
  %651 = vmatprep.subr.bf16.mxu0 0
  %652 = vmatpush1.bf16.msra.mxu0 0
  %653 = vmatprep.mubr.bf16.mxu0 0
  %654 = vmatmul.mubr.bf16.gmra.mrb[0].mxu0 %v619
  %v655 = vpop.f32.mrb[0].mxu0
  %v656 = vadd.f32 0.0, %v655
  %v657 = vpop.f32.mrb[0].mxu0
  %v658 = vadd.f32 0.0, %v657
  %v659 = vpop.f32.mrb[0].mxu0
  %v660 = vpop.f32.mrb[0].mxu0
  %661 = vdwg.mxu0
  %v662 = vadd.f32 %v612, %v656
  %v663 = vadd.f32 %v613, %v658
  %v664 = vxor.u32 %v662, 2147483648
  %v665 = vxor.u32 %v663, 2147483648
  %v666 = vmul.f32 %v664, 1.442695
  %v667 = vpow.pop %v666
  %v668 = vmul.f32 %v665, 1.442695
  %v669 = vpow.pop %v668
  %v670 = vadd.f32 %v667, 1.0
  %v671 = vadd.f32 %v669, 1.0
  %v672 = vrcp.pop %v670
  %v673 = vmul.f32 1.0, %v672
  %v674 = vrcp.pop %v671
  %v675 = vmul.f32 1.0, %v674
  %v676 = vmul.f32 %v673, %v393
  %v677 = vmul.f32 %v675, %v394
  %v678 = vadd.f32 %v676, %v395
  %v679 = vadd.f32 %v677, %v396
  %v680 = vmul.f32 %v678, %v605
  %v681 = vmul.f32 %v678, %v679
  %683 = vrot.lane.b32.xlu0 %v681, 64
  %v684 = vpop.permute.xlu0 %683
  %v686 = vadd.f32 %v680, %v684
  %v687 = vtanh.pop %v686
  %v688 = vmul.f32 %v679, %v687
  %v689 = vld [vmem:[#allocation2 + $0x30] sm:$0xff]
  %v690 = vld [vmem:[#allocation2 + $0x38] sm:$0xff]
  %v691 = vld [vmem:[#allocation2 + $0x40] sm:$0xff]
  %v692 = vld [vmem:[#allocation2 + $0x48] sm:$0xff]
  %v693 = vsel %vm411, %v689, %v691
  %v694 = vsel %vm412, %v690, %v692
  %v695 = vpack.c.bf16 %v688, %v688
  %697 = vrot.lane.b32.xlu0 %v695, 64
  %v698 = vpop.permute.xlu0 %697
  %v700 = vsel %vm455, %v698, 0
  %702 = vmatprep.subr.bf16.mxu0 %v440
  %703 = vmatpush1.bf16.msra.mxu0 %v439
  %704 = vmatprep.subr.bf16.mxu0 %v442
  %705 = vmatpush1.bf16.msra.mxu0 %v441
  %706 = vmatprep.subr.bf16.mxu0 %v444
  %707 = vmatpush1.bf16.msra.mxu0 %v443
  %708 = vmatprep.subr.bf16.mxu0 %v446
  %709 = vmatpush1.bf16.msra.mxu0 %v445
  %710 = vmatprep.subr.bf16.mxu0 0
  %711 = vmatpush1.bf16.msra.mxu0 0
  %712 = vmatprep.subr.bf16.mxu0 0
  %713 = vmatpush1.bf16.msra.mxu0 0
  %714 = vmatprep.subr.bf16.mxu0 0
  %715 = vmatpush1.bf16.msra.mxu0 0
  %716 = vmatprep.subr.bf16.mxu0 0
  %717 = vmatpush1.bf16.msra.mxu0 0
  %718 = vmatprep.subr.bf16.mxu0 0
  %719 = vmatpush1.bf16.msra.mxu0 0
  %720 = vmatprep.subr.bf16.mxu0 0
  %721 = vmatpush1.bf16.msra.mxu0 0
  %722 = vmatprep.subr.bf16.mxu0 0
  %723 = vmatpush1.bf16.msra.mxu0 0
  %724 = vmatprep.subr.bf16.mxu0 0
  %725 = vmatpush1.bf16.msra.mxu0 0
  %726 = vmatprep.subr.bf16.mxu0 0
  %727 = vmatpush1.bf16.msra.mxu0 0
  %728 = vmatprep.subr.bf16.mxu0 0
  %729 = vmatpush1.bf16.msra.mxu0 0
  %730 = vmatprep.subr.bf16.mxu0 0
  %731 = vmatpush1.bf16.msra.mxu0 0
  %732 = vmatprep.subr.bf16.mxu0 0
  %733 = vmatpush1.bf16.msra.mxu0 0
  %734 = vmatprep.mubr.bf16.mxu0 0
  %735 = vmatmul.mubr.bf16.gmra.mrb[0].mxu0 %v700
  %v736 = vpop.f32.mrb[0].mxu0
  %v737 = vadd.f32 0.0, %v736
  %v738 = vpop.f32.mrb[0].mxu0
  %v739 = vadd.f32 0.0, %v738
  %v740 = vpop.f32.mrb[0].mxu0
  %v741 = vpop.f32.mrb[0].mxu0
  %742 = vdwg.mxu0
  %v743 = vadd.f32 %v693, %v737
  %v744 = vadd.f32 %v694, %v739
  %v745 = vxor.u32 %v743, 2147483648
  %v746 = vxor.u32 %v744, 2147483648
  %v747 = vmul.f32 %v745, 1.442695
  %v748 = vpow.pop %v747
  %v749 = vmul.f32 %v746, 1.442695
  %v750 = vpow.pop %v749
  %v751 = vadd.f32 %v748, 1.0
  %v752 = vadd.f32 %v750, 1.0
  %v753 = vrcp.pop %v751
  %v754 = vmul.f32 1.0, %v753
  %v755 = vrcp.pop %v752
  %v756 = vmul.f32 1.0, %v755
  %v757 = vmul.f32 %v754, %v393
  %v758 = vmul.f32 %v756, %v394
  %v759 = vadd.f32 %v757, %v395
  %v760 = vadd.f32 %v758, %v396
  %v761 = vmul.f32 %v759, %v686
  %v762 = vmul.f32 %v759, %v760
  %764 = vrot.lane.b32.xlu0 %v762, 64
  %v765 = vpop.permute.xlu0 %764
  %v767 = vadd.f32 %v761, %v765
  %v768 = vtanh.pop %v767
  %v769 = vmul.f32 %v760, %v768
  %v770 = vsel %vm411, %v691, %v689
  %v771 = vsel %vm412, %v692, %v690
  %v772 = vpack.c.bf16 %v769, %v769
  %774 = vrot.lane.b32.xlu0 %v772, 64
  %v775 = vpop.permute.xlu0 %774
  %v777 = vsel %vm455, %v775, 0
  %779 = vmatprep.subr.bf16.mxu0 %v440
  %780 = vmatpush1.bf16.msra.mxu0 %v439
  %781 = vmatprep.subr.bf16.mxu0 %v442
  %782 = vmatpush1.bf16.msra.mxu0 %v441
  %783 = vmatprep.subr.bf16.mxu0 %v444
  %784 = vmatpush1.bf16.msra.mxu0 %v443
  %785 = vmatprep.subr.bf16.mxu0 %v446
  %786 = vmatpush1.bf16.msra.mxu0 %v445
  %787 = vmatprep.subr.bf16.mxu0 0
  %788 = vmatpush1.bf16.msra.mxu0 0
  %789 = vmatprep.subr.bf16.mxu0 0
  %790 = vmatpush1.bf16.msra.mxu0 0
  %791 = vmatprep.subr.bf16.mxu0 0
  %792 = vmatpush1.bf16.msra.mxu0 0
  %793 = vmatprep.subr.bf16.mxu0 0
  %794 = vmatpush1.bf16.msra.mxu0 0
  %795 = vmatprep.subr.bf16.mxu0 0
  %796 = vmatpush1.bf16.msra.mxu0 0
  %797 = vmatprep.subr.bf16.mxu0 0
  %798 = vmatpush1.bf16.msra.mxu0 0
  %799 = vmatprep.subr.bf16.mxu0 0
  %800 = vmatpush1.bf16.msra.mxu0 0
  %801 = vmatprep.subr.bf16.mxu0 0
  %802 = vmatpush1.bf16.msra.mxu0 0
  %803 = vmatprep.subr.bf16.mxu0 0
  %804 = vmatpush1.bf16.msra.mxu0 0
  %805 = vmatprep.subr.bf16.mxu0 0
  %806 = vmatpush1.bf16.msra.mxu0 0
  %807 = vmatprep.subr.bf16.mxu0 0
  %808 = vmatpush1.bf16.msra.mxu0 0
  %809 = vmatprep.subr.bf16.mxu0 0
  %810 = vmatpush1.bf16.msra.mxu0 0
  %811 = vmatprep.mubr.bf16.mxu0 0
  %812 = vmatmul.mubr.bf16.gmra.mrb[0].mxu0 %v777
  %v813 = vpop.f32.mrb[0].mxu0
  %v814 = vadd.f32 0.0, %v813
  %v815 = vpop.f32.mrb[0].mxu0
  %v816 = vadd.f32 0.0, %v815
  %v817 = vpop.f32.mrb[0].mxu0
  %v818 = vpop.f32.mrb[0].mxu0
  %819 = vdwg.mxu0
  %v820 = vadd.f32 %v770, %v814
  %v821 = vadd.f32 %v771, %v816
  %v822 = vxor.u32 %v820, 2147483648
  %v823 = vxor.u32 %v821, 2147483648
  %v824 = vmul.f32 %v822, 1.442695
  %v825 = vpow.pop %v824
  %v826 = vmul.f32 %v823, 1.442695
  %v827 = vpow.pop %v826
  %v828 = vadd.f32 %v825, 1.0
  %v829 = vadd.f32 %v827, 1.0
  %v830 = vrcp.pop %v828
  %v831 = vmul.f32 1.0, %v830
  %v832 = vrcp.pop %v829
  %v833 = vmul.f32 1.0, %v832
  %v834 = vmul.f32 %v831, %v393
  %v835 = vmul.f32 %v833, %v394
  %v836 = vadd.f32 %v834, %v395
  %v837 = vadd.f32 %v835, %v396
  %v838 = vmul.f32 %v836, %v767
  %v839 = vmul.f32 %v836, %v837
  %841 = vrot.lane.b32.xlu0 %v839, 64
  %v842 = vpop.permute.xlu0 %841
  %v844 = vadd.f32 %v838, %v842
  %v845 = vtanh.pop %v844
  %v846 = vmul.f32 %v837, %v845
  %v847 = vsel %vm411, %v610, %v608
  %v848 = vsel %vm412, %v611, %v609
  %v849 = vpack.c.bf16 %v846, %v846
  %851 = vrot.lane.b32.xlu0 %v849, 64
  %v852 = vpop.permute.xlu0 %851
  %v854 = vsel %vm455, %v852, 0
  %856 = vmatprep.subr.bf16.mxu0 %v440
  %857 = vmatpush1.bf16.msra.mxu0 %v439
  %858 = vmatprep.subr.bf16.mxu0 %v442
  %859 = vmatpush1.bf16.msra.mxu0 %v441
  %860 = vmatprep.subr.bf16.mxu0 %v444
  %861 = vmatpush1.bf16.msra.mxu0 %v443
  %862 = vmatprep.subr.bf16.mxu0 %v446
  %863 = vmatpush1.bf16.msra.mxu0 %v445
  %864 = vmatprep.subr.bf16.mxu0 0
  %865 = vmatpush1.bf16.msra.mxu0 0
  %866 = vmatprep.subr.bf16.mxu0 0
  %867 = vmatpush1.bf16.msra.mxu0 0
  %868 = vmatprep.subr.bf16.mxu0 0
  %869 = vmatpush1.bf16.msra.mxu0 0
  %870 = vmatprep.subr.bf16.mxu0 0
  %871 = vmatpush1.bf16.msra.mxu0 0
  %872 = vmatprep.subr.bf16.mxu0 0
  %873 = vmatpush1.bf16.msra.mxu0 0
  %874 = vmatprep.subr.bf16.mxu0 0
  %875 = vmatpush1.bf16.msra.mxu0 0
  %876 = vmatprep.subr.bf16.mxu0 0
  %877 = vmatpush1.bf16.msra.mxu0 0
  %878 = vmatprep.subr.bf16.mxu0 0
  %879 = vmatpush1.bf16.msra.mxu0 0
  %880 = vmatprep.subr.bf16.mxu0 0
  %881 = vmatpush1.bf16.msra.mxu0 0
  %882 = vmatprep.subr.bf16.mxu0 0
  %883 = vmatpush1.bf16.msra.mxu0 0
  %884 = vmatprep.subr.bf16.mxu0 0
  %885 = vmatpush1.bf16.msra.mxu0 0
  %886 = vmatprep.subr.bf16.mxu0 0
  %887 = vmatpush1.bf16.msra.mxu0 0
  %888 = vmatprep.mubr.bf16.mxu0 0
  %889 = vmatmul.mubr.bf16.gmra.mrb[0].mxu0 %v854
  %v890 = vpop.f32.mrb[0].mxu0
  %v891 = vadd.f32 0.0, %v890
  %v892 = vpop.f32.mrb[0].mxu0
  %v893 = vadd.f32 0.0, %v892
  %v894 = vpop.f32.mrb[0].mxu0
  %v895 = vpop.f32.mrb[0].mxu0
  %896 = vdwg.mxu0
  %v897 = vadd.f32 %v847, %v891
  %v898 = vadd.f32 %v848, %v893
  %v899 = vxor.u32 %v897, 2147483648
  %v900 = vxor.u32 %v898, 2147483648
  %v901 = vmul.f32 %v899, 1.442695
  %v902 = vpow.pop %v901
  %v903 = vmul.f32 %v900, 1.442695
  %v904 = vpow.pop %v903
  %v905 = vadd.f32 %v902, 1.0
  %v906 = vadd.f32 %v904, 1.0
  %v907 = vrcp.pop %v905
  %v908 = vmul.f32 1.0, %v907
  %v909 = vrcp.pop %v906
  %v910 = vmul.f32 1.0, %v909
  %v911 = vmul.f32 %v908, %v393
  %v912 = vmul.f32 %v910, %v394
  %v913 = vadd.f32 %v911, %v395
  %v914 = vadd.f32 %v912, %v396
  %v915 = vmul.f32 %v913, %v844
  %v916 = vmul.f32 %v913, %v914
  %918 = vrot.lane.b32.xlu0 %v916, 64
  %v919 = vpop.permute.xlu0 %918
  %v921 = vadd.f32 %v915, %v919
  %v922 = vtanh.pop %v921
  %v923 = vmul.f32 %v914, %v922
  %v924 = vsel %vm411, %v529, %v527
  %v925 = vsel %vm412, %v530, %v528
  %v926 = vpack.c.bf16 %v923, %v923
  %928 = vrot.lane.b32.xlu0 %v926, 64
  %v929 = vpop.permute.xlu0 %928
  %v931 = vsel %vm455, %v929, 0
  %933 = vmatprep.subr.bf16.mxu0 %v440
  %934 = vmatpush1.bf16.msra.mxu0 %v439
  %935 = vmatprep.subr.bf16.mxu0 %v442
  %936 = vmatpush1.bf16.msra.mxu0 %v441
  %937 = vmatprep.subr.bf16.mxu0 %v444
  %938 = vmatpush1.bf16.msra.mxu0 %v443
  %939 = vmatprep.subr.bf16.mxu0 %v446
  %940 = vmatpush1.bf16.msra.mxu0 %v445
  %941 = vmatprep.subr.bf16.mxu0 0
  %942 = vmatpush1.bf16.msra.mxu0 0
  %943 = vmatprep.subr.bf16.mxu0 0
  %944 = vmatpush1.bf16.msra.mxu0 0
  %945 = vmatprep.subr.bf16.mxu0 0
  %946 = vmatpush1.bf16.msra.mxu0 0
  %947 = vmatprep.subr.bf16.mxu0 0
  %948 = vmatpush1.bf16.msra.mxu0 0
  %949 = vmatprep.subr.bf16.mxu0 0
  %950 = vmatpush1.bf16.msra.mxu0 0
  %951 = vmatprep.subr.bf16.mxu0 0
  %952 = vmatpush1.bf16.msra.mxu0 0
  %953 = vmatprep.subr.bf16.mxu0 0
  %954 = vmatpush1.bf16.msra.mxu0 0
  %955 = vmatprep.subr.bf16.mxu0 0
  %956 = vmatpush1.bf16.msra.mxu0 0
  %957 = vmatprep.subr.bf16.mxu0 0
  %958 = vmatpush1.bf16.msra.mxu0 0
  %959 = vmatprep.subr.bf16.mxu0 0
  %960 = vmatpush1.bf16.msra.mxu0 0
  %961 = vmatprep.subr.bf16.mxu0 0
  %962 = vmatpush1.bf16.msra.mxu0 0
  %963 = vmatprep.subr.bf16.mxu0 0
  %964 = vmatpush1.bf16.msra.mxu0 0
  %965 = vmatprep.mubr.bf16.mxu0 0
  %966 = vmatmul.mubr.bf16.gmra.mrb[0].mxu0 %v931
  %v967 = vpop.f32.mrb[0].mxu0
  %v968 = vadd.f32 0.0, %v967
  %v969 = vpop.f32.mrb[0].mxu0
  %v970 = vadd.f32 0.0, %v969
  %v971 = vpop.f32.mrb[0].mxu0
  %v972 = vpop.f32.mrb[0].mxu0
  %973 = vdwg.mxu0
  %v974 = vadd.f32 %v924, %v968
  %v975 = vadd.f32 %v925, %v970
  %v976 = vxor.u32 %v974, 2147483648
  %v977 = vxor.u32 %v975, 2147483648
  %v978 = vmul.f32 %v976, 1.442695
  %v979 = vpow.pop %v978
  %v980 = vmul.f32 %v977, 1.442695
  %v981 = vpow.pop %v980
  %v982 = vadd.f32 %v979, 1.0
  %v983 = vadd.f32 %v981, 1.0
  %v984 = vrcp.pop %v982
  %v985 = vmul.f32 1.0, %v984
  %v986 = vrcp.pop %v983
  %v987 = vmul.f32 1.0, %v986
  %v988 = vmul.f32 %v985, %v393
  %v989 = vmul.f32 %v987, %v394
  %v990 = vadd.f32 %v988, %v395
  %v991 = vadd.f32 %v989, %v396
  %v992 = vmul.f32 %v990, %v921
  %v993 = vmul.f32 %v990, %v991
  %995 = vrot.lane.b32.xlu0 %v993, 64
  %v996 = vpop.permute.xlu0 %995
  %v998 = vadd.f32 %v992, %v996
  %v999 = vtanh.pop %v998
  %v1000 = vmul.f32 %v991, %v999
  %v1001 = vsel %vm411, %v407, %v405
  %v1002 = vsel %vm412, %v408, %v406
  %v1003 = vpack.c.bf16 %v1000, %v1000
  %1005 = vrot.lane.b32.xlu0 %v1003, 64
  %v1006 = vpop.permute.xlu0 %1005
  %v1008 = vsel %vm455, %v1006, 0
  %1010 = vmatprep.subr.bf16.mxu0 %v440
  %1011 = vmatpush1.bf16.msra.mxu0 %v439
  %1012 = vmatprep.subr.bf16.mxu0 %v442
  %1013 = vmatpush1.bf16.msra.mxu0 %v441
  %1014 = vmatprep.subr.bf16.mxu0 %v444
  %1015 = vmatpush1.bf16.msra.mxu0 %v443
  %1016 = vmatprep.subr.bf16.mxu0 %v446
  %1017 = vmatpush1.bf16.msra.mxu0 %v445
  %1018 = vmatprep.subr.bf16.mxu0 0
  %1019 = vmatpush1.bf16.msra.mxu0 0
  %1020 = vmatprep.subr.bf16.mxu0 0
  %1021 = vmatpush1.bf16.msra.mxu0 0
  %1022 = vmatprep.subr.bf16.mxu0 0
  %1023 = vmatpush1.bf16.msra.mxu0 0
  %1024 = vmatprep.subr.bf16.mxu0 0
  %1025 = vmatpush1.bf16.msra.mxu0 0
  %1026 = vmatprep.subr.bf16.mxu0 0
  %1027 = vmatpush1.bf16.msra.mxu0 0
  %1028 = vmatprep.subr.bf16.mxu0 0
  %1029 = vmatpush1.bf16.msra.mxu0 0
  %1030 = vmatprep.subr.bf16.mxu0 0
  %1031 = vmatpush1.bf16.msra.mxu0 0
  %1032 = vmatprep.subr.bf16.mxu0 0
  %1033 = vmatpush1.bf16.msra.mxu0 0
  %1034 = vmatprep.subr.bf16.mxu0 0
  %1035 = vmatpush1.bf16.msra.mxu0 0
  %1036 = vmatprep.subr.bf16.mxu0 0
  %1037 = vmatpush1.bf16.msra.mxu0 0
  %1038 = vmatprep.subr.bf16.mxu0 0
  %1039 = vmatpush1.bf16.msra.mxu0 0
  %1040 = vmatprep.subr.bf16.mxu0 0
  %1041 = vmatpush1.bf16.msra.mxu0 0
  %1042 = vmatprep.mubr.bf16.mxu0 0
  %1043 = vmatmul.mubr.bf16.gmra.mrb[0].mxu0 %v1008
  %v1044 = vpop.f32.mrb[0].mxu0
  %v1045 = vadd.f32 0.0, %v1044
  %v1046 = vpop.f32.mrb[0].mxu0
  %v1047 = vadd.f32 0.0, %v1046
  %v1048 = vpop.f32.mrb[0].mxu0
  %v1049 = vpop.f32.mrb[0].mxu0
  %1050 = vdwg.mxu0
  %v1051 = vadd.f32 %v1001, %v1045
  %v1052 = vadd.f32 %v1002, %v1047
  %v1053 = vxor.u32 %v1051, 2147483648
  %v1054 = vxor.u32 %v1052, 2147483648
  %v1055 = vmul.f32 %v1053, 1.442695
  %v1056 = vpow.pop %v1055
  %v1057 = vmul.f32 %v1054, 1.442695
  %v1058 = vpow.pop %v1057
  %v1059 = vadd.f32 %v1056, 1.0
  %v1060 = vadd.f32 %v1058, 1.0
  %v1061 = vrcp.pop %v1059
  %v1062 = vmul.f32 1.0, %v1061
  %v1063 = vrcp.pop %v1060
  %v1064 = vmul.f32 1.0, %v1063
  %v1065 = vmul.f32 %v1062, %v393
  %v1066 = vmul.f32 %v1064, %v394
  %v1067 = vadd.f32 %v1065, %v395
  %v1068 = vadd.f32 %v1066, %v396
  %v1069 = vmul.f32 %v1067, %v998
  %v1070 = vmul.f32 %v1067, %v1068
  %1072 = vrot.lane.b32.xlu0 %v1070, 64
  %v1073 = vpop.permute.xlu0 %1072
  %v1075 = vadd.f32 %v1069, %v1073
  %v1076 = vtanh.pop %v1075
  %v1077 = vmul.f32 %v1068, %v1076
  %v1078 = vpack.c.bf16 %v1077, %v1077
  %v1079 = vld [vmem:[%s5] sm:$0xf]
  %v1080 = vld [vmem:[%s5 + $0x4] sm:$0xf]
  %v1081 = vld [vmem:[%s5 + $0x8] sm:$0xf]
  %v1082 = vld [vmem:[%s5 + $0xc] sm:$0xf]
  %v1083 = vld [vmem:[%s5 + $0x10] sm:$0xf]
  %v1084 = vld [vmem:[%s5 + $0x14] sm:$0xf]
  %v1085 = vld [vmem:[%s5 + $0x18] sm:$0xf]
  %v1086 = vld [vmem:[%s5 + $0x1c] sm:$0xf]
  %v1087 = vld [vmem:[%s6] sm:$0x1]
  %v1089 = vlaneseq
  %v1090 = vshrl.u32 %v1089, 7
  %v1091 = vsub.s32 0, %v1090
  %v1092 = vrot.slane %v1087, %v1091
  %1095 = vrot.lane.b32.xlu0 %v1078, 64
  %v1096 = vpop.permute.xlu0 %1095
  %v1105 = vunpack.c.l.b16 %v1079
  %v1106 = vunpack.c.l.b16 %v1080
  %v1107 = vunpack.c.l.b16 %v1081
  %v1108 = vunpack.c.l.b16 %v1082
  %v1109 = vunpack.c.l.b16 %v1083
  %v1110 = vunpack.c.l.b16 %v1084
  %v1111 = vunpack.c.l.b16 %v1085
  %v1112 = vunpack.c.l.b16 %v1086
  %v1113 = vpack.c.b16 %v1106, %v1105
  %v1114 = vpack.c.b16 %v1108, %v1107
  %v1115 = vpack.c.b16 %v1110, %v1109
  %v1116 = vpack.c.b16 %v1112, %v1111
  %v1122 = vsel %vm455, %v1096, 0
  %1124 = vmatprep.subr.bf16.mxu0 0
  %1125 = vmatpush1.bf16.msra.mxu0 %v1113
  %1126 = vmatprep.subr.bf16.mxu0 0
  %1127 = vmatpush1.bf16.msra.mxu0 %v1114
  %1128 = vmatprep.subr.bf16.mxu0 0
  %1129 = vmatpush1.bf16.msra.mxu0 %v1115
  %1130 = vmatprep.subr.bf16.mxu0 0
  %1131 = vmatpush1.bf16.msra.mxu0 %v1116
  %1132 = vmatprep.subr.bf16.mxu0 0
  %1133 = vmatpush1.bf16.msra.mxu0 0
  %1134 = vmatprep.subr.bf16.mxu0 0
  %1135 = vmatpush1.bf16.msra.mxu0 0
  %1136 = vmatprep.subr.bf16.mxu0 0
  %1137 = vmatpush1.bf16.msra.mxu0 0
  %1138 = vmatprep.subr.bf16.mxu0 0
  %1139 = vmatpush1.bf16.msra.mxu0 0
  %1140 = vmatprep.subr.bf16.mxu0 0
  %1141 = vmatpush1.bf16.msra.mxu0 0
  %1142 = vmatprep.subr.bf16.mxu0 0
  %1143 = vmatpush1.bf16.msra.mxu0 0
  %1144 = vmatprep.subr.bf16.mxu0 0
  %1145 = vmatpush1.bf16.msra.mxu0 0
  %1146 = vmatprep.subr.bf16.mxu0 0
  %1147 = vmatpush1.bf16.msra.mxu0 0
  %1148 = vmatprep.subr.bf16.mxu0 0
  %1149 = vmatpush1.bf16.msra.mxu0 0
  %1150 = vmatprep.subr.bf16.mxu0 0
  %1151 = vmatpush1.bf16.msra.mxu0 0
  %1152 = vmatprep.subr.bf16.mxu0 0
  %1153 = vmatpush1.bf16.msra.mxu0 0
  %1154 = vmatprep.subr.bf16.mxu0 0
  %1155 = vmatpush1.bf16.msra.mxu0 0
  %1156 = vmatprep.mubr.bf16.mxu0 0
  %1157 = vmatmul.mubr.bf16.gmra.mrb[0].mxu0 %v1122
  %v1158 = vpop.f32.mrb[0].mxu0
  %v1159 = vadd.f32 %v1092, %v1158
  %v1160 = vpop.f32.mrb[0].mxu0
  %v1161 = vpop.f32.mrb[0].mxu0
  %v1162 = vpop.f32.mrb[0].mxu0
  %1163 = vdwg.mxu0
  %1164 = vst [vmem:[%s7] sm:$0xff] %v1159
  // Predicated region
  $region30: #{intent_model_forward.1} parent=0 // pred_check
    _
  $region31: #{intent_model_forward.1} parent=0 // pred_check_branch
    %1166 = sbr.rel (0) target = $region33
  $region32: #{intent_model_forward.1} parent=0 // pred_region
    _
  $region33: #{intent_model_forward.1} parent=0 // pred_fallthru
    _
  // Predicated region
  $region34: #{intent_model_forward.1} parent=0 // pred_check
    _
  $region35: #{intent_model_forward.1} parent=0 // pred_check_branch
    %1168 = sbr.rel (0) target = $region37
  $region36: #{intent_model_forward.1} parent=0 // pred_region
    _
  $region37: #{intent_model_forward.1} parent=0 // pred_fallthru
    _

</llo_original>
